<compile_context>
chip_gen: v7x
topology: tpu7x:2x2x1
jax: 0.10.0
libtpu: 0.0.40
codegen_flags: <defaults>
</compile_context>

<pallas_src>
import functools

import jax
import jax.numpy as jnp
from jax.experimental import pallas as pl
from jax.experimental.pallas import tpu as pltpu


def _round_up(v, m):
    return (v + m - 1) // m * m


def _padded_block_bytes(shape, dtype):
    """VMEM footprint of one block: lane dim padded to 128, sublane dim padded
    to the dtype's sublane packing (8 rows for 4-byte, 16 for 2-byte, 32 for
    1-byte)."""
    itemsize = jnp.dtype(dtype).itemsize
    sublane = {4: 8, 2: 16, 1: 32}.get(itemsize, 8)
    dims = list(shape)
    dims[-1] = _round_up(dims[-1], 128)
    if len(dims) >= 2:
        dims[-2] = _round_up(dims[-2], sublane)
    n = 1
    for d in dims:
        n *= d
    return n * itemsize


def _conv_shifted_matmul_kernel(x_ref, w_ref, b_ref, o_ref, *,
                                kh_size, kw_size, c_in, wp, tm, ext):
    """One (image n, Cout-tile co, M-tile m) grid step.

    x_ref : [1, M_in_pad, C_in]  bf16  whole flat image (resident across co, m)
    w_ref : [KH*KW*C_in, TCO]    bf16  (resident across m)
    b_ref : [1, TCO]             f32   (resident across m)
    o_ref : [1, TM, TCO]         out_dtype
    """
    m = pl.program_id(2)
    base = pl.multiple_of(m * tm, 16)        # tm is a multiple of 16 -> aligned bf16 load

    # One aligned superwindow load per tile; every tap is a static, in-register
    # slice of it (no per-tap misaligned VMEM reloads of overlapping rows).
    sw = x_ref[0, pl.ds(base, tm + ext), :]  # [TM + ext, C_in] bf16

    # Accumulate in vregs (local value), seeded by the first tap's dot: no
    # VMEM accumulator read-modify-write; the output block is stored once.
    acc = None
    for kh in range(kh_size):
        for kw in range(kw_size):
            koff = kh * wp + kw                              # static row shift
            kidx = kh * kw_size + kw
            patch = sw[koff:koff + tm, :]                    # [TM, C_in]  bf16
            w_k = w_ref[kidx * c_in:(kidx + 1) * c_in, :]    # [C_in, TCO] bf16
            d = jnp.dot(patch, w_k, preferred_element_type=jnp.float32)
            acc = d if acc is None else acc + d
    # TODO(synk): for very small C_in (the stem / early layers) fuse all KH*KW
    # taps into a single [TM, KH*KW*C_in] @ [KH*KW*C_in, TCO] contraction
    # (requires unaligned lane concatenation in-kernel) to fill the MXU K depth.

    o_ref[0] = jnp.maximum(acc + b_ref[...], 0.0).astype(o_ref.dtype)


def basic_conv2d(x, weight, bias, stride=1, padding=0, *,
                 out_dtype=jnp.float32, tco=None, tm_max=None):
    """Conv2d(stride, padding, bias=True) + ReLU.

    x: [N, C_in, H, W], weight: [C_out, C_in, KH, KW], bias: [C_out].
    Returns [N, C_out, OH, OW] in `out_dtype` (float32 matches the PyTorch
    module; pass jnp.bfloat16 to halve output HBM traffic for bf16 consumers).
    """
    N, C_in, H, W = x.shape
    C_out, C_in_w, KH, KW = weight.shape
    assert C_in == C_in_w

    if padding > 0:
        x = jnp.pad(x, ((0, 0), (0, 0), (padding, padding), (padding, padding)))
    Hp, Wp = H + 2 * padding, W + 2 * padding
    OH1, OW1 = Hp - KH + 1, Wp - KW + 1      # dense (stride=1) output extents

    # NCHW -> NHWC, flatten spatial: tap (kh, kw) becomes a row shift kh*Wp+kw.
    x_flat = jnp.transpose(x, (0, 2, 3, 1)).reshape(N, Hp * Wp, C_in)

    # ---- tiling ----------------------------------------------------------
    # Lane-dense output tiles. 256 fills the 256-wide MXU on v6e/v7x once
    # C_out is large enough; pass tco=128 explicitly on v5e (4x128x128 MXU).
    if tco is None:
        tco = 256 if C_out >= 192 else 128
    TCO = tco
    C_out_pad = _round_up(C_out, TCO)
    n_co = C_out_pad // TCO

    # TM sized so the in-vreg f32 accumulator stays at ~<= 32 vregs.
    if tm_max is None:
        tm_max = 256 if TCO <= 128 else 128
    M_needed = OH1 * Wp                      # dense rows incl. right-edge junk cols
    TM = min(_round_up(tm_max, 16), _round_up(M_needed, 16))
    n_m = pl.cdiv(M_needed, TM)
    M_out_pad = n_m * TM
    ext = (KH - 1) * Wp + (KW - 1)           # superwindow overhang per tile
    M_in_pad = M_out_pad + ext

    x_flat = jnp.pad(x_flat, ((0, 0), (0, M_in_pad - Hp * Wp), (0, 0)))
    x_flat = x_flat.astype(jnp.bfloat16)

    # weight [C_out, C_in, KH, KW] -> [(kh, kw, ci), C_out_pad] bf16
    w_mat = jnp.transpose(weight, (2, 3, 1, 0)).reshape(KH * KW * C_in, C_out)
    w_mat = jnp.pad(w_mat, ((0, 0), (0, C_out_pad - C_out))).astype(jnp.bfloat16)
    b_mat = jnp.pad(bias, (0, C_out_pad - C_out)).reshape(1, C_out_pad)
    b_mat = b_mat.astype(jnp.float32)

    # ---- per-layer VMEM budget (double-buffered blocks), capped for v7x ----
    est = 2 * (_padded_block_bytes((1, M_in_pad, C_in), jnp.bfloat16)
               + _padded_block_bytes((KH * KW * C_in, TCO), jnp.bfloat16)
               + _padded_block_bytes((1, TCO), jnp.float32)
               + _padded_block_bytes((1, TM, TCO), out_dtype)) + (2 << 20)
    vmem_limit = int(min(max(est, 32 << 20), 56 << 20))
    # TODO(synk): for very large images (224x224 stem) the resident lane-padded
    # image block dominates; tile it along M instead of keeping the whole image
    # resident if `est` approaches the v7x 64 MiB budget.

    kernel = functools.partial(
        _conv_shifted_matmul_kernel,
        kh_size=KH, kw_size=KW, c_in=C_in, wp=Wp, tm=TM, ext=ext)

    out_flat = pl.pallas_call(
        kernel,
        out_shape=jax.ShapeDtypeStruct((N, M_out_pad, C_out_pad), out_dtype),
        grid_spec=pltpu.PrefetchScalarGridSpec(
            num_scalar_prefetch=0,
            # m innermost -> weight/bias block indices constant along m (DMA'd
            # once per co); flat image constant along (co, m) (DMA'd once per n).
            grid=(N, n_co, n_m),
            in_specs=[
                pl.BlockSpec((1, M_in_pad, C_in), lambda n, co, m: (n, 0, 0)),
                pl.BlockSpec((KH * KW * C_in, TCO), lambda n, co, m: (0, co)),
                pl.BlockSpec((1, TCO), lambda n, co, m: (0, co)),
            ],
            out_specs=pl.BlockSpec((1, TM, TCO), lambda n, co, m: (n, m, co)),
        ),
        compiler_params=pltpu.CompilerParams(
            dimension_semantics=("parallel", "parallel", "parallel"),
            vmem_limit_bytes=vmem_limit),
    )(x_flat, w_mat, b_mat)

    # Strip C_out padding and right-edge junk columns; back to NCHW.
    out = out_flat[:, :OH1 * Wp, :C_out].reshape(N, OH1, Wp, C_out)[:, :, :OW1, :]
    # TODO(synk): skip this transpose (return NHWC) if the surrounding model is
    # channels-last; NCHW kept here to match the PyTorch module exactly.
    out = jnp.transpose(out, (0, 3, 1, 2))   # [N, C_out, OH1, OW1]
    if stride > 1:
        # TODO(synk): make the m/row index math stride-aware instead of dense
        # compute + subsample (saves ~stride^2 x FLOPs/writeback on the stem).
        out = out[:, :, ::stride, ::stride]
    return out


if __name__ == "__main__":
    # BasicConv2d(in_channels=4, out_channels=8, kernel_size=3) on [2, 4, 16, 16].
    N, C_in, H, W = 2, 4, 16, 16
    C_out, KH, KW = 8, 3, 3

    key = jax.random.PRNGKey(0)
    kx, kw_, kb = jax.random.split(key, 3)

    x = jax.random.normal(kx, (N, C_in, H, W), dtype=jnp.float32)
    fan_in = C_in * KH * KW
    weight = jax.random.normal(kw_, (C_out, C_in, KH, KW),
                               dtype=jnp.float32) / jnp.sqrt(fan_in)
    bias = jax.random.normal(kb, (C_out,), dtype=jnp.float32) * 0.1

    conv = jax.jit(basic_conv2d, static_argnames=("stride", "padding"))
    out = conv(x, weight, bias, stride=1, padding=0)
    jax.block_until_ready(out)
    assert out.shape == (N, C_out, H - KH + 1, W - KW + 1)

    # Tight check against XLA conv on the same bf16-rounded inputs (the kernel
    # uses bf16 inputs/weights with f32 accumulation).
    x_q = x.astype(jnp.bfloat16).astype(jnp.float32)
    w_q = weight.astype(jnp.bfloat16).astype(jnp.float32)
    ref_q = jax.lax.conv_general_dilated(
        x_q, w_q, window_strides=(1, 1), padding="VALID",
        dimension_numbers=("NCHW", "OIHW", "NCHW"),
        precision=jax.lax.Precision.HIGHEST,
    ) + bias.reshape(1, C_out, 1, 1)
    ref_q = jnp.maximum(ref_q, 0.0)
    assert jnp.allclose(out, ref_q, atol=1e-2, rtol=1e-2), \
        float(jnp.max(jnp.abs(out - ref_q)))

    # Loose sanity check against the full-f32 reference (bf16 input rounding).
    ref = jax.lax.conv_general_dilated(
        x, weight, window_strides=(1, 1), padding="VALID",
        dimension_numbers=("NCHW", "OIHW", "NCHW"),
        precision=jax.lax.Precision.HIGHEST,
    ) + bias.reshape(1, C_out, 1, 1)
    ref = jnp.maximum(ref, 0.0)
    assert jnp.allclose(out, ref, atol=6e-2, rtol=6e-2), \
        float(jnp.max(jnp.abs(out - ref)))

    print("KERNEL_OK")
</pallas_src>

<mosaic_0001>
module attributes {stable_mosaic.version = 11 : i64} {
  func.func @_conv_shifted_matmul_kernel(%arg0: i32, %arg1: i32, %arg2: i32, %arg3: memref<1x258x4xbf16, #tpu.memory_space<vmem>>, %arg4: memref<36x128xbf16, #tpu.memory_space<vmem>>, %arg5: memref<1x128xf32, #tpu.memory_space<vmem>>, %arg6: memref<1x224x128xf32, #tpu.memory_space<vmem>>) attributes {dimension_semantics = [#tpu.dimension_semantics<parallel>, #tpu.dimension_semantics<parallel>, #tpu.dimension_semantics<parallel>], iteration_bounds = array<i64: 2, 1, 1>, scalar_prefetch = 0 : i64, scratch_operands = 0 : i64, tpu.core_type = #tpu.core_type<tc>, window_params = [{transform_indices = @transform_0, window_bounds = array<i64: 1, 258, 4>}, {transform_indices = @transform_1, window_bounds = array<i64: 36, 128>}, {transform_indices = @transform_2, window_bounds = array<i64: 1, 128>}, {transform_indices = @transform_3, window_bounds = array<i64: 1, 224, 128>}]} {
    %c224_i32 = arith.constant 224 : i32
    %0 = arith.muli %arg2, %c224_i32 : i32
    %1 = tpu.assume_multiple %0, 16 : i32
    %c0 = arith.constant 0 : index
    %2 = arith.index_cast %1 : i32 to index
    %c0_0 = arith.constant 0 : index
    %3 = vector.load %arg3[%c0, %2, %c0_0] : memref<1x258x4xbf16, #tpu.memory_space<vmem>>, vector<1x258x4xbf16>
    %4 = vector.shape_cast %3 : vector<1x258x4xbf16> to vector<258x4xbf16>
    %5 = vector.extract_strided_slice %4 {offsets = [0, 0], sizes = [224, 4], strides = [1, 1]} : vector<258x4xbf16> to vector<224x4xbf16>
    %c0_1 = arith.constant 0 : index
    %c0_2 = arith.constant 0 : index
    %6 = vector.load %arg4[%c0_1, %c0_2] : memref<36x128xbf16, #tpu.memory_space<vmem>>, vector<4x128xbf16>
    %cst = arith.constant dense<0.000000e+00> : vector<224x128xf32>
    %7 = tpu.matmul %5, %6, %cst {dimension_numbers = #tpu.dot_dimension_numbers<[1], [0], [0], [1], [0, 0, 1, 1], [], []>} : vector<224x4xbf16>, vector<4x128xbf16>, vector<224x128xf32> -> vector<224x128xf32>
    %8 = vector.extract_strided_slice %4 {offsets = [1, 0], sizes = [224, 4], strides = [1, 1]} : vector<258x4xbf16> to vector<224x4xbf16>
    %c4 = arith.constant 4 : index
    %c0_3 = arith.constant 0 : index
    %9 = vector.load %arg4[%c4, %c0_3] : memref<36x128xbf16, #tpu.memory_space<vmem>>, vector<4x128xbf16>
    %cst_4 = arith.constant dense<0.000000e+00> : vector<224x128xf32>
    %10 = tpu.matmul %8, %9, %cst_4 {dimension_numbers = #tpu.dot_dimension_numbers<[1], [0], [0], [1], [0, 0, 1, 1], [], []>} : vector<224x4xbf16>, vector<4x128xbf16>, vector<224x128xf32> -> vector<224x128xf32>
    %11 = arith.addf %7, %10 : vector<224x128xf32>
    %12 = vector.extract_strided_slice %4 {offsets = [2, 0], sizes = [224, 4], strides = [1, 1]} : vector<258x4xbf16> to vector<224x4xbf16>
    %c8 = arith.constant 8 : index
    %c0_5 = arith.constant 0 : index
    %13 = vector.load %arg4[%c8, %c0_5] : memref<36x128xbf16, #tpu.memory_space<vmem>>, vector<4x128xbf16>
    %cst_6 = arith.constant dense<0.000000e+00> : vector<224x128xf32>
    %14 = tpu.matmul %12, %13, %cst_6 {dimension_numbers = #tpu.dot_dimension_numbers<[1], [0], [0], [1], [0, 0, 1, 1], [], []>} : vector<224x4xbf16>, vector<4x128xbf16>, vector<224x128xf32> -> vector<224x128xf32>
    %15 = arith.addf %11, %14 : vector<224x128xf32>
    %16 = vector.extract_strided_slice %4 {offsets = [16, 0], sizes = [224, 4], strides = [1, 1]} : vector<258x4xbf16> to vector<224x4xbf16>
    %c12 = arith.constant 12 : index
    %c0_7 = arith.constant 0 : index
    %17 = vector.load %arg4[%c12, %c0_7] : memref<36x128xbf16, #tpu.memory_space<vmem>>, vector<4x128xbf16>
    %cst_8 = arith.constant dense<0.000000e+00> : vector<224x128xf32>
    %18 = tpu.matmul %16, %17, %cst_8 {dimension_numbers = #tpu.dot_dimension_numbers<[1], [0], [0], [1], [0, 0, 1, 1], [], []>} : vector<224x4xbf16>, vector<4x128xbf16>, vector<224x128xf32> -> vector<224x128xf32>
    %19 = arith.addf %15, %18 : vector<224x128xf32>
    %20 = vector.extract_strided_slice %4 {offsets = [17, 0], sizes = [224, 4], strides = [1, 1]} : vector<258x4xbf16> to vector<224x4xbf16>
    %c16 = arith.constant 16 : index
    %c0_9 = arith.constant 0 : index
    %21 = vector.load %arg4[%c16, %c0_9] : memref<36x128xbf16, #tpu.memory_space<vmem>>, vector<4x128xbf16>
    %cst_10 = arith.constant dense<0.000000e+00> : vector<224x128xf32>
    %22 = tpu.matmul %20, %21, %cst_10 {dimension_numbers = #tpu.dot_dimension_numbers<[1], [0], [0], [1], [0, 0, 1, 1], [], []>} : vector<224x4xbf16>, vector<4x128xbf16>, vector<224x128xf32> -> vector<224x128xf32>
    %23 = arith.addf %19, %22 : vector<224x128xf32>
    %24 = vector.extract_strided_slice %4 {offsets = [18, 0], sizes = [224, 4], strides = [1, 1]} : vector<258x4xbf16> to vector<224x4xbf16>
    %c20 = arith.constant 20 : index
    %c0_11 = arith.constant 0 : index
    %25 = vector.load %arg4[%c20, %c0_11] : memref<36x128xbf16, #tpu.memory_space<vmem>>, vector<4x128xbf16>
    %cst_12 = arith.constant dense<0.000000e+00> : vector<224x128xf32>
    %26 = tpu.matmul %24, %25, %cst_12 {dimension_numbers = #tpu.dot_dimension_numbers<[1], [0], [0], [1], [0, 0, 1, 1], [], []>} : vector<224x4xbf16>, vector<4x128xbf16>, vector<224x128xf32> -> vector<224x128xf32>
    %27 = arith.addf %23, %26 : vector<224x128xf32>
    %28 = vector.extract_strided_slice %4 {offsets = [32, 0], sizes = [224, 4], strides = [1, 1]} : vector<258x4xbf16> to vector<224x4xbf16>
    %c24 = arith.constant 24 : index
    %c0_13 = arith.constant 0 : index
    %29 = vector.load %arg4[%c24, %c0_13] : memref<36x128xbf16, #tpu.memory_space<vmem>>, vector<4x128xbf16>
    %cst_14 = arith.constant dense<0.000000e+00> : vector<224x128xf32>
    %30 = tpu.matmul %28, %29, %cst_14 {dimension_numbers = #tpu.dot_dimension_numbers<[1], [0], [0], [1], [0, 0, 1, 1], [], []>} : vector<224x4xbf16>, vector<4x128xbf16>, vector<224x128xf32> -> vector<224x128xf32>
    %31 = arith.addf %27, %30 : vector<224x128xf32>
    %32 = vector.extract_strided_slice %4 {offsets = [33, 0], sizes = [224, 4], strides = [1, 1]} : vector<258x4xbf16> to vector<224x4xbf16>
    %c28 = arith.constant 28 : index
    %c0_15 = arith.constant 0 : index
    %33 = vector.load %arg4[%c28, %c0_15] : memref<36x128xbf16, #tpu.memory_space<vmem>>, vector<4x128xbf16>
    %cst_16 = arith.constant dense<0.000000e+00> : vector<224x128xf32>
    %34 = tpu.matmul %32, %33, %cst_16 {dimension_numbers = #tpu.dot_dimension_numbers<[1], [0], [0], [1], [0, 0, 1, 1], [], []>} : vector<224x4xbf16>, vector<4x128xbf16>, vector<224x128xf32> -> vector<224x128xf32>
    %35 = arith.addf %31, %34 : vector<224x128xf32>
    %36 = vector.extract_strided_slice %4 {offsets = [34, 0], sizes = [224, 4], strides = [1, 1]} : vector<258x4xbf16> to vector<224x4xbf16>
    %c32 = arith.constant 32 : index
    %c0_17 = arith.constant 0 : index
    %37 = vector.load %arg4[%c32, %c0_17] : memref<36x128xbf16, #tpu.memory_space<vmem>>, vector<4x128xbf16>
    %cst_18 = arith.constant dense<0.000000e+00> : vector<224x128xf32>
    %38 = tpu.matmul %36, %37, %cst_18 {dimension_numbers = #tpu.dot_dimension_numbers<[1], [0], [0], [1], [0, 0, 1, 1], [], []>} : vector<224x4xbf16>, vector<4x128xbf16>, vector<224x128xf32> -> vector<224x128xf32>
    %39 = arith.addf %35, %38 : vector<224x128xf32>
    %c0_19 = arith.constant 0 : index
    %c0_20 = arith.constant 0 : index
    %40 = vector.load %arg5[%c0_19, %c0_20] : memref<1x128xf32, #tpu.memory_space<vmem>>, vector<1x128xf32>
    %41 = vector.broadcast %40 : vector<1x128xf32> to vector<224x128xf32>
    %42 = arith.addf %39, %41 : vector<224x128xf32>
    %cst_21 = arith.constant 0.000000e+00 : f32
    %43 = vector.broadcast %cst_21 : f32 to vector<224x128xf32>
    %44 = arith.maximumf %42, %43 : vector<224x128xf32>
    %c0_22 = arith.constant 0 : index
    %c0_23 = arith.constant 0 : index
    %c0_24 = arith.constant 0 : index
    %45 = vector.load %arg6[%c0_22, %c0_23, %c0_24] : memref<1x224x128xf32, #tpu.memory_space<vmem>>, vector<1x224x128xf32>
    %46 = vector.shape_cast %45 : vector<1x224x128xf32> to vector<224x128xf32>
    %47 = vector.shape_cast %44 : vector<224x128xf32> to vector<1x224x128xf32>
    tpu.vector_store %arg6[%c0_22, %c0_23, %c0_24], %47 {strides = array<i32>} : memref<1x224x128xf32, #tpu.memory_space<vmem>>, vector<1x224x128xf32>,
    return
  }
  func.func @transform_0(%arg0: i32, %arg1: i32, %arg2: i32) -> (i32, i32, i32) {
    %c0_i32 = arith.constant 0 : i32
    %c0_i32_0 = arith.constant 0 : i32
    %c0_i32_1 = arith.constant 0 : i32
    return %arg0, %c0_i32, %c0_i32_0 : i32, i32, i32
  }
  func.func @transform_1(%arg0: i32, %arg1: i32, %arg2: i32) -> (i32, i32) {
    %c0_i32 = arith.constant 0 : i32
    %c0_i32_0 = arith.constant 0 : i32
    return %c0_i32, %arg1 : i32, i32
  }
  func.func @transform_2(%arg0: i32, %arg1: i32, %arg2: i32) -> (i32, i32) {
    %c0_i32 = arith.constant 0 : i32
    %c0_i32_0 = arith.constant 0 : i32
    return %c0_i32, %arg1 : i32, i32
  }
  func.func @transform_3(%arg0: i32, %arg1: i32, %arg2: i32) -> (i32, i32, i32) {
    %c0_i32 = arith.constant 0 : i32
    return %arg0, %arg2, %arg1 : i32, i32, i32
  }
}

</mosaic_0001>

<llo_original>
// kernel: basic_conv2d.1
$region0: #{basic_conv2d.1}
  #allocation0 [shape = 'u32[]', space=smem, size = 0x4, offset = 0x4, fixed_abs, tag = 'smem constant byte address 0x4 - core index']
  #allocation1 [shape = 'u32[144,128]{1,0:T(1,128)}', space=vmem, size = 0x12000, scoped, tag = 'internal scratch']
  %s0 = inlined_call_operand.vmem [shape: bf16[2,258,4], index: 0, kind: input, shape index: {}]
  %s1 = inlined_call_operand.vmem [shape: bf16[36,128], index: 1, kind: input, shape index: {}]
  %s2 = inlined_call_operand.vmem [shape: f32[1,128], index: 2, kind: input, shape index: {}]
  %s3 = inlined_call_operand.vmem [shape: f32[2,224,128], index: 3, kind: output, shape index: {}]
  %s4 = sld [smem:[#allocation0]]
  $region45: #{basic_conv2d.1} parent=0
    _
  %s6 = ssub.s32 1, %s4
  %s7 = scalar_select 0, %s6, %s4
  loop: start=0, step=1, limit=4
  $region2: #{basic_conv2d.1} parent=0 // loop_pre_header
    _
  $region3: #{basic_conv2d.1} parent=0 // loop_header
    %s9 = sphi 0, %s13
    %p10 = scmp.ge.s32.totalorder %s9, 4
    %s16 = sphi 0, %s35
    %s17 = sphi 0, %s31
    %s18 = sphi 0, %s27
    %s19 = sphi 0, %s16
    %s20 = sphi 0, %s17
    %s21 = sphi 0, %s18
    %s22 = sphi 0, %s19
    %s23 = sphi 0, %s20
    %s24 = sphi 0, %s21
    %s38 = sphi 0, %s40
    %s41 = sphi 0, %s38
    %s42 = sphi 0, %s41
    %s58 = sphi 0, %s42
    %s64 = sphi 0, %s66
    %s67 = sphi 0, %s64
    %s68 = sphi 0, %s67
    %s84 = sphi 0, %s68
    %s90 = sphi 0, %s92
    %s93 = sphi 0, %s90
    %s94 = sphi 0, %s93
    %s110 = sphi 0, %s94
    %s120 = sphi 0, %s122
    %s123 = sphi 0, %s120
    %s124 = sphi 0, %s123
    %s140 = sphi 0, %s124
  $region4: #{basic_conv2d.1} parent=0 // loop_header_branch
    %12 = sbr.rel (%p10) target = $region8
  $region5: #{basic_conv2d.1} parent=0 // loop_body
    %s14 = ssub.s32 %s9, 1
    %s15 = ssub.s32 %s9, 2
    %s25 = sadd.s32 1, %s18
    %p26 = scmp.ge.s32.totalorder %s25, 1
    %s27 = scalar_select %p26, 0, %s25
    %s28 = sadd.s32 1, %s17
    %s29 = scalar_select %p26, %s28, %s17
    %p30 = scmp.ge.s32.totalorder %s29, 1
    %s31 = scalar_select %p30, 0, %s29
    %s32 = sadd.s32 1, %s16
    %s33 = scalar_select %p30, %s32, %s16
    %p34 = scmp.ge.s32.totalorder %s33, 2
    %s35 = scalar_select %p34, 0, %s33
    %s36 = ssub.s32 %s16, %s35
    %p37 = scmp.eq.s32.totalorder %s36, 0
    %s39 = sadd.s32 %s38, 1
    %s40 = scalar_select %p37, %s38, %s39
    %p43 = pneg %p37
    %p44 = scmp.eq.s32.totalorder %s9, 1
    %p45 = por %p43, %p44
    %p46 = scmp.ne.s32.totalorder %s38, %s41
    %p47 = scmp.eq.s32.totalorder %s9, 0
    %p48 = por %p46, %p47
    %p49 = scmp.ne.s32.totalorder %s38, %s41
    %p50 = scmp.eq.s32.totalorder %s14, 1
    %p51 = por %p49, %p50
    %p52 = scmp.ne.s32.totalorder %s41, %s42
    %p53 = scmp.eq.s32.totalorder %s14, 0
    %p54 = por %p52, %p53
    %p55 = scmp.ne.s32.totalorder %s41, %s42
    %p56 = scmp.eq.s32.totalorder %s15, 1
    %p57 = por %p55, %p56
    %p59 = scmp.ne.s32.totalorder %s42, %s58
    %p60 = scmp.eq.s32.totalorder %s15, 0
    %p61 = por %p59, %p60
    %s62 = ssub.s32 %s17, %s31
    %p63 = scmp.eq.s32.totalorder %s62, 0
    %s65 = sadd.s32 %s64, 1
    %s66 = scalar_select %p63, %s64, %s65
    %p69 = pneg %p63
    %p70 = scmp.eq.s32.totalorder %s9, 1
    %p71 = por %p69, %p70
    %p72 = scmp.ne.s32.totalorder %s64, %s67
    %p73 = scmp.eq.s32.totalorder %s9, 0
    %p74 = por %p72, %p73
    %p75 = scmp.ne.s32.totalorder %s64, %s67
    %p76 = scmp.eq.s32.totalorder %s14, 1
    %p77 = por %p75, %p76
    %p78 = scmp.ne.s32.totalorder %s67, %s68
    %p79 = scmp.eq.s32.totalorder %s14, 0
    %p80 = por %p78, %p79
    %p81 = scmp.ne.s32.totalorder %s67, %s68
    %p82 = scmp.eq.s32.totalorder %s15, 1
    %p83 = por %p81, %p82
    %p85 = scmp.ne.s32.totalorder %s68, %s84
    %p86 = scmp.eq.s32.totalorder %s15, 0
    %p87 = por %p85, %p86
    %s88 = ssub.s32 %s17, %s31
    %p89 = scmp.eq.s32.totalorder %s88, 0
    %s91 = sadd.s32 %s90, 1
    %s92 = scalar_select %p89, %s90, %s91
    %p95 = pneg %p89
    %p96 = scmp.eq.s32.totalorder %s9, 1
    %p97 = por %p95, %p96
    %p98 = scmp.ne.s32.totalorder %s90, %s93
    %p99 = scmp.eq.s32.totalorder %s9, 0
    %p100 = por %p98, %p99
    %p101 = scmp.ne.s32.totalorder %s90, %s93
    %p102 = scmp.eq.s32.totalorder %s14, 1
    %p103 = por %p101, %p102
    %p104 = scmp.ne.s32.totalorder %s93, %s94
    %p105 = scmp.eq.s32.totalorder %s14, 0
    %p106 = por %p104, %p105
    %p107 = scmp.ne.s32.totalorder %s93, %s94
    %p108 = scmp.eq.s32.totalorder %s15, 1
    %p109 = por %p107, %p108
    %p111 = scmp.ne.s32.totalorder %s94, %s110
    %p112 = scmp.eq.s32.totalorder %s15, 0
    %p113 = por %p111, %p112
    %s114 = ssub.s32 %s16, %s35
    %s115 = ssub.s32 %s18, %s27
    %s116 = sor.u32 %s114, %s115
    %s117 = ssub.s32 %s17, %s31
    %s118 = sor.u32 %s116, %s117
    %p119 = scmp.eq.s32.totalorder %s118, 0
    %s121 = sadd.s32 %s120, 1
    %s122 = scalar_select %p119, %s120, %s121
    %p125 = pneg %p119
    %p126 = scmp.eq.s32.totalorder %s9, 1
    %p127 = por %p125, %p126
    %p128 = scmp.ne.s32.totalorder %s120, %s123
    %p129 = scmp.eq.s32.totalorder %s9, 0
    %p130 = por %p128, %p129
    %p131 = scmp.ne.s32.totalorder %s120, %s123
    %p132 = scmp.eq.s32.totalorder %s14, 1
    %p133 = por %p131, %p132
    %p134 = scmp.ne.s32.totalorder %s123, %s124
    %p135 = scmp.eq.s32.totalorder %s14, 0
    %p136 = por %p134, %p135
    %p137 = scmp.ne.s32.totalorder %s123, %s124
    %p138 = scmp.eq.s32.totalorder %s15, 1
    %p139 = por %p137, %p138
    %p141 = scmp.ne.s32.totalorder %s124, %s140
    %p142 = scmp.eq.s32.totalorder %s15, 0
    %p143 = por %p141, %p142
    %p144 = scmp.le.s32.totalorder 1, %s9
    %p145 = scmp.lt.s32.totalorder %s9, 3
    %p146 = pnand %p144, %p145
    %p147 = pneg %p146
    // Predicated region
    $region9: #{basic_conv2d.1} parent=5 // pred_check
      _
    $region10: #{basic_conv2d.1} parent=5 // pred_check_branch
      %149 = sbr.rel (%p146) target = $region12
    $region11: #{basic_conv2d.1} parent=5 // pred_region
      %s150 = ssub.s32 %s9, 1
      // Predicated region
      $region13: #{basic_conv2d.1} parent=11 // pred_check
        %p151 = pneg %p80
      $region14: #{basic_conv2d.1} parent=11 // pred_check_branch
        %153 = sbr.rel (%p151) target = $region16
      $region15: #{basic_conv2d.1} parent=11 // pred_region
        %p154 = scmp.lt.s32.totalorder %s20, 0
        %s155 = scalar_select %p154, %s20, 0
        %s156 = smul.addr %s155, 4
        %s157 = scalar_lea.vmem %s1, %s156
      $region16: #{basic_conv2d.1} parent=11 // pred_fallthru
        _
      // Predicated region
      $region17: #{basic_conv2d.1} parent=11 // pred_check
        %p158 = pneg %p106
      $region18: #{basic_conv2d.1} parent=11 // pred_check_branch
        %160 = sbr.rel (%p158) target = $region20
      $region19: #{basic_conv2d.1} parent=11 // pred_region
        %p161 = scmp.lt.s32.totalorder %s20, 0
        %s162 = scalar_select %p161, %s20, 0
        %s163 = scalar_lea.vmem %s2, %s162
      $region20: #{basic_conv2d.1} parent=11 // pred_fallthru
        _
    $region12: #{basic_conv2d.1} parent=5 // pred_fallthru
      _
    %p164 = scmp.lt.s32.totalorder %s9, 2
    // Predicated region
    $region21: #{basic_conv2d.1} parent=5 // pred_check
      %p165 = pneg %p164
    $region22: #{basic_conv2d.1} parent=5 // pred_check_branch
      %167 = sbr.rel (%p165) target = $region24
    $region23: #{basic_conv2d.1} parent=5 // pred_region
      // Predicated region
      $region25: #{basic_conv2d.1} parent=23 // pred_check
        %p168 = pneg %p48
      $region26: #{basic_conv2d.1} parent=23 // pred_check_branch
        %170 = sbr.rel (%p168) target = $region28
      $region27: #{basic_conv2d.1} parent=23 // pred_region
        %p171 = scmp.lt.s32.totalorder %s16, 1
        %s172 = scalar_select %p171, %s16, 1
        %s173 = smul.addr %s172, 33
        %s174 = smul.addr %s173, 4
        %s175 = scalar_lea.vmem %s0, %s174
      $region28: #{basic_conv2d.1} parent=23 // pred_fallthru
        _
    $region24: #{basic_conv2d.1} parent=5 // pred_fallthru
      _
    %p176 = scmp.le.s32.totalorder 1, %s9
    %p177 = scmp.lt.s32.totalorder %s9, 3
    %p178 = pnand %p176, %p177
    %p179 = pneg %p178
    // Predicated region
    $region29: #{basic_conv2d.1} parent=5 // pred_check
      _
    $region30: #{basic_conv2d.1} parent=5 // pred_check_branch
      %181 = sbr.rel (%p178) target = $region32
    $region31: #{basic_conv2d.1} parent=5 // pred_region
      %s182 = ssub.s32 %s9, 1
      %p183 = scmp.lt.s32.totalorder %s19, 1
      %s184 = scalar_select %p183, %s19, 1
      %s185 = smul.addr %s184, 33
      %s186 = smul.addr %s185, 4
      %s187 = scalar_lea.vmem %s0, %s186
      %p188 = pneg %p54
      %p189 = pneg %p51
      %p190 = scmp.lt.s32.totalorder %s20, 0
      %s191 = scalar_select %p190, %s20, 0
      %s192 = smul.addr %s191, 4
      %s193 = scalar_lea.vmem %s1, %s192
      %p194 = pneg %p80
      %p195 = pneg %p77
      %p196 = scmp.lt.s32.totalorder %s20, 0
      %s197 = scalar_select %p196, %s20, 0
      %s198 = scalar_lea.vmem %s2, %s197
      %p199 = pneg %p106
      %p200 = pneg %p103
      %p201 = pneg %p136
      %p202 = pneg %p133
      %s203 = smul.u32 28, %s21
      %p204 = scmp.lt.s32.totalorder %s19, 1
      %s205 = scalar_select %p204, %s19, 1
      %p206 = scmp.lt.s32.totalorder %s203, 27
      %s207 = scalar_select %p206, %s203, 27
      %p208 = scmp.lt.s32.totalorder %s20, 0
      %s209 = scalar_select %p208, %s20, 0
      %s210 = sadd.s32 %s209, %s207
      %s211 = smul.addr %s205, 28
      %s212 = sadd.s32 %s210, %s211
      %s213 = smul.addr %s212, 8
      %s214 = scalar_lea.vmem %s3, %s213
      %p215 = scmp.lt.s32.totalorder %s19, 1
      %s216 = scalar_select %p215, %s19, 1
      %s217 = smul.addr %s216, 33
      %s218 = smul.addr %s217, 4
      %s219 = scalar_lea.vmem %s0, %s218
      %p220 = scmp.lt.s32.totalorder %s20, 0
      %s221 = scalar_select %p220, %s20, 0
      %s222 = smul.addr %s221, 4
      %s223 = scalar_lea.vmem %s1, %s222
      %p224 = scmp.lt.s32.totalorder %s20, 0
      %s225 = scalar_select %p224, %s20, 0
      %s226 = scalar_lea.vmem %s2, %s225
      %s227 = smul.u32 28, %s21
      %p228 = scmp.lt.s32.totalorder %s19, 1
      %s229 = scalar_select %p228, %s19, 1
      %p230 = scmp.lt.s32.totalorder %s227, 27
      %s231 = scalar_select %p230, %s227, 27
      %p232 = scmp.lt.s32.totalorder %s20, 0
      %s233 = scalar_select %p232, %s20, 0
      %s234 = sadd.s32 %s233, %s231
      %s235 = smul.addr %s229, 28
      %s236 = sadd.s32 %s234, %s235
      %s237 = smul.addr %s236, 8
      %s238 = scalar_lea.vmem %s3, %s237
      %s239 = smul.u32 28, %s21
      %s241 = smul.u32 %s21, 224
      %s242 = sshra.s32 %s241, 3
      %s243 = sand.u32 %s241, 7
      %s244 = smul.addr %s242, 4
      %s245 = scalar_lea.vmem %s219, %s244
      %v246 = vld [vmem:[%s245] sm:$0xf]
      %v247 = vld [vmem:[%s245 + $0x4] sm:$0xf]
      %v248 = vld [vmem:[%s245 + $0x8] sm:$0xf]
      %v249 = vld [vmem:[%s245 + $0xc] sm:$0xf]
      %v250 = vld [vmem:[%s245 + $0x10] sm:$0xf]
      %v251 = vld [vmem:[%s245 + $0x14] sm:$0xf]
      %v252 = vld [vmem:[%s245 + $0x18] sm:$0xf]
      %v253 = vld [vmem:[%s245 + $0x1c] sm:$0xf]
      %v254 = vld [vmem:[%s245 + $0x20] sm:$0xf]
      %v255 = vld [vmem:[%s245 + $0x24] sm:$0xf]
      %v256 = vld [vmem:[%s245 + $0x28] sm:$0xf]
      %v257 = vld [vmem:[%s245 + $0x2c] sm:$0xf]
      %v258 = vld [vmem:[%s245 + $0x30] sm:$0xf]
      %v259 = vld [vmem:[%s245 + $0x34] sm:$0xf]
      %v260 = vld [vmem:[%s245 + $0x38] sm:$0xf]
      %v261 = vld [vmem:[%s245 + $0x3c] sm:$0xf]
      %v262 = vld [vmem:[%s245 + $0x40] sm:$0xf]
      %v263 = vld [vmem:[%s245 + $0x44] sm:$0xf]
      %v264 = vld [vmem:[%s245 + $0x48] sm:$0xf]
      %v265 = vld [vmem:[%s245 + $0x4c] sm:$0xf]
      %v266 = vld [vmem:[%s245 + $0x50] sm:$0xf]
      %v267 = vld [vmem:[%s245 + $0x54] sm:$0xf]
      %v268 = vld [vmem:[%s245 + $0x58] sm:$0xf]
      %v269 = vld [vmem:[%s245 + $0x5c] sm:$0xf]
      %v270 = vld [vmem:[%s245 + $0x60] sm:$0xf]
      %v271 = vld [vmem:[%s245 + $0x64] sm:$0xf]
      %v272 = vld [vmem:[%s245 + $0x68] sm:$0xf]
      %v273 = vld [vmem:[%s245 + $0x6c] sm:$0xf]
      %v274 = vld [vmem:[%s245 + $0x70] sm:$0xf]
      %v275 = vld [vmem:[%s245 + $0x74] sm:$0xf]
      %v276 = vld [vmem:[%s245 + $0x78] sm:$0xf]
      %v277 = vld [vmem:[%s245 + $0x7c] sm:$0xf]
      %v278 = vld [vmem:[%s245 + $0x80] sm:$0x1]
      %v279 = vld [vmem:[%s223] sm:$0x3]
      %v280 = vld [vmem:[%s223] sm:$0xc]
      %v310 = vunpack.c.l.b16 %v246
      %v311 = vunpack.c.l.b16 %v247
      %v312 = vunpack.c.l.b16 %v248
      %v313 = vunpack.c.l.b16 %v249
      %v314 = vunpack.c.l.b16 %v250
      %v315 = vunpack.c.l.b16 %v251
      %v316 = vunpack.c.l.b16 %v252
      %v317 = vunpack.c.l.b16 %v253
      %v318 = vunpack.c.l.b16 %v254
      %v319 = vunpack.c.l.b16 %v255
      %v320 = vunpack.c.l.b16 %v256
      %v321 = vunpack.c.l.b16 %v257
      %v322 = vunpack.c.l.b16 %v258
      %v323 = vunpack.c.l.b16 %v259
      %v324 = vunpack.c.l.b16 %v260
      %v325 = vunpack.c.l.b16 %v261
      %v326 = vunpack.c.l.b16 %v262
      %v327 = vunpack.c.l.b16 %v263
      %v328 = vunpack.c.l.b16 %v264
      %v329 = vunpack.c.l.b16 %v265
      %v330 = vunpack.c.l.b16 %v266
      %v331 = vunpack.c.l.b16 %v267
      %v332 = vunpack.c.l.b16 %v268
      %v333 = vunpack.c.l.b16 %v269
      %v334 = vunpack.c.l.b16 %v270
      %v335 = vunpack.c.l.b16 %v271
      %v336 = vunpack.c.l.b16 %v272
      %v337 = vunpack.c.l.b16 %v273
      %v338 = vunpack.c.l.b16 %v274
      %v339 = vpack.c.b16 %v311, %v310
      %v340 = vpack.c.b16 %v313, %v312
      %v341 = vpack.c.b16 %v315, %v314
      %v342 = vpack.c.b16 %v317, %v316
      %v343 = vpack.c.b16 %v319, %v318
      %v344 = vpack.c.b16 %v321, %v320
      %v345 = vpack.c.b16 %v323, %v322
      %v346 = vpack.c.b16 %v325, %v324
      %v347 = vpack.c.b16 %v327, %v326
      %v348 = vpack.c.b16 %v329, %v328
      %v349 = vpack.c.b16 %v331, %v330
      %v350 = vpack.c.b16 %v333, %v332
      %v351 = vpack.c.b16 %v335, %v334
      %v352 = vpack.c.b16 %v337, %v336
      %v353 = vpack.c.b16 %v338, %v338
      %vm354 = vsmask.f32 7424
      %v356 = vshrl.u32 %v339, 16
      %v358 = vshll.u32 %v339, 16
      %v360 = vrot.slane %v358, 1
      %v361 = vor.u32 %v356, %v360
      %v363 = vshll.u32 %v340, 16
      %v365 = vrot.slane %v363, 1
      %v366 = vsel %vm354, %v361, %v365
      %v367 = vshrl.u32 %v340, 16
      %v369 = vor.u32 %v367, %v365
      %v371 = vshll.u32 %v341, 16
      %v373 = vrot.slane %v371, 1
      %v374 = vsel %vm354, %v369, %v373
      %v375 = vshrl.u32 %v341, 16
      %v377 = vor.u32 %v375, %v373
      %v379 = vshll.u32 %v342, 16
      %v381 = vrot.slane %v379, 1
      %v382 = vsel %vm354, %v377, %v381
      %v383 = vshrl.u32 %v342, 16
      %v385 = vor.u32 %v383, %v381
      %v387 = vshll.u32 %v343, 16
      %v389 = vrot.slane %v387, 1
      %v390 = vsel %vm354, %v385, %v389
      %v391 = vshrl.u32 %v343, 16
      %v393 = vor.u32 %v391, %v389
      %v395 = vshll.u32 %v344, 16
      %v397 = vrot.slane %v395, 1
      %v398 = vsel %vm354, %v393, %v397
      %v399 = vshrl.u32 %v344, 16
      %v401 = vor.u32 %v399, %v397
      %v403 = vshll.u32 %v345, 16
      %v405 = vrot.slane %v403, 1
      %v406 = vsel %vm354, %v401, %v405
      %v407 = vshrl.u32 %v345, 16
      %v409 = vor.u32 %v407, %v405
      %v411 = vshll.u32 %v346, 16
      %v413 = vrot.slane %v411, 1
      %v414 = vsel %vm354, %v409, %v413
      %v415 = vshrl.u32 %v346, 16
      %v417 = vor.u32 %v415, %v413
      %v419 = vshll.u32 %v347, 16
      %v421 = vrot.slane %v419, 1
      %v422 = vsel %vm354, %v417, %v421
      %v423 = vshrl.u32 %v347, 16
      %v425 = vor.u32 %v423, %v421
      %v427 = vshll.u32 %v348, 16
      %v429 = vrot.slane %v427, 1
      %v430 = vsel %vm354, %v425, %v429
      %v431 = vshrl.u32 %v348, 16
      %v433 = vor.u32 %v431, %v429
      %v435 = vshll.u32 %v349, 16
      %v437 = vrot.slane %v435, 1
      %v438 = vsel %vm354, %v433, %v437
      %v439 = vshrl.u32 %v349, 16
      %v441 = vor.u32 %v439, %v437
      %v443 = vshll.u32 %v350, 16
      %v445 = vrot.slane %v443, 1
      %v446 = vsel %vm354, %v441, %v445
      %v447 = vshrl.u32 %v350, 16
      %v449 = vor.u32 %v447, %v445
      %v451 = vshll.u32 %v351, 16
      %v453 = vrot.slane %v451, 1
      %v454 = vsel %vm354, %v449, %v453
      %v455 = vshrl.u32 %v351, 16
      %v457 = vor.u32 %v455, %v453
      %v459 = vshll.u32 %v352, 16
      %v461 = vrot.slane %v459, 1
      %v462 = vsel %vm354, %v457, %v461
      %v463 = vshrl.u32 %v352, 16
      %v465 = vor.u32 %v463, %v461
      %v467 = vshll.u32 %v353, 16
      %v469 = vrot.slane %v467, 1
      %v470 = vsel %vm354, %v465, %v469
      %v472 = vunpack.c.l.b16 %v280
      %v473 = vpack.c.b16 %v472, %v472
      %v474 = vrot.slane %v473, 2
      %vm475 = vcmask 31744
      %v477 = vsel %vm475, %v366, 0
      %v480 = vsel %vm475, %v374, 0
      %v483 = vsel %vm475, %v382, 0
      %v486 = vsel %vm475, %v390, 0
      %v489 = vsel %vm475, %v398, 0
      %v492 = vsel %vm475, %v406, 0
      %v495 = vsel %vm475, %v414, 0
      %v498 = vsel %vm475, %v422, 0
      %v501 = vsel %vm475, %v430, 0
      %v504 = vsel %vm475, %v438, 0
      %v507 = vsel %vm475, %v446, 0
      %v510 = vsel %vm475, %v454, 0
      %v513 = vsel %vm475, %v462, 0
      %v516 = vsel %vm475, %v470, 0
      %vm518 = vcmask 1041408
      %v520 = vsel %vm518, %v474, 0
      %522 = vmatprep.subr.bf16.mxu0 0
      %523 = vmatpush1.bf16.msra.mxu0 %v520
      %524 = vmatprep.subr.bf16.mxu0 0
      %525 = vmatpush1.bf16.msra.mxu0 0
      %526 = vmatprep.subr.bf16.mxu0 0
      %527 = vmatpush1.bf16.msra.mxu0 0
      %528 = vmatprep.subr.bf16.mxu0 0
      %529 = vmatpush1.bf16.msra.mxu0 0
      %530 = vmatprep.subr.bf16.mxu0 0
      %531 = vmatpush1.bf16.msra.mxu0 0
      %532 = vmatprep.subr.bf16.mxu0 0
      %533 = vmatpush1.bf16.msra.mxu0 0
      %534 = vmatprep.subr.bf16.mxu0 0
      %535 = vmatpush1.bf16.msra.mxu0 0
      %536 = vmatprep.subr.bf16.mxu0 0
      %537 = vmatpush1.bf16.msra.mxu0 0
      %538 = vmatprep.subr.bf16.mxu0 0
      %539 = vmatpush1.bf16.msra.mxu0 0
      %540 = vmatprep.subr.bf16.mxu0 0
      %541 = vmatpush1.bf16.msra.mxu0 0
      %542 = vmatprep.subr.bf16.mxu0 0
      %543 = vmatpush1.bf16.msra.mxu0 0
      %544 = vmatprep.subr.bf16.mxu0 0
      %545 = vmatpush1.bf16.msra.mxu0 0
      %546 = vmatprep.subr.bf16.mxu0 0
      %547 = vmatpush1.bf16.msra.mxu0 0
      %548 = vmatprep.subr.bf16.mxu0 0
      %549 = vmatpush1.bf16.msra.mxu0 0
      %550 = vmatprep.subr.bf16.mxu0 0
      %551 = vmatpush1.bf16.msra.mxu0 0
      %552 = vmatprep.subr.bf16.mxu0 0
      %553 = vmatpush1.bf16.msra.mxu0 0
      %554 = vmatprep.mubr.bf16.mxu0 0
      %555 = vmatmul.mubr.bf16.gmra.mrb[0].mxu0 %v477
      %v556 = vpop.f32.mrb[0].mxu0
      %v557 = vadd.f32 0.0, %v556
      %v558 = vpop.f32.mrb[0].mxu0
      %v559 = vpop.f32.mrb[0].mxu0
      %v560 = vadd.f32 0.0, %v559
      %v561 = vpop.f32.mrb[0].mxu0
      %562 = vmatprep.mubr.bf16.mxu0 0
      %563 = vmatmul.mubr.bf16.gmra.mrb[0].mxu0 %v480
      %v564 = vpop.f32.mrb[0].mxu0
      %v565 = vadd.f32 0.0, %v564
      %v566 = vpop.f32.mrb[0].mxu0
      %v567 = vpop.f32.mrb[0].mxu0
      %v568 = vadd.f32 0.0, %v567
      %v569 = vpop.f32.mrb[0].mxu0
      %570 = vmatprep.mubr.bf16.mxu0 0
      %571 = vmatmul.mubr.bf16.gmra.mrb[0].mxu0 %v483
      %v572 = vpop.f32.mrb[0].mxu0
      %v573 = vadd.f32 0.0, %v572
      %v574 = vpop.f32.mrb[0].mxu0
      %v575 = vpop.f32.mrb[0].mxu0
      %v576 = vadd.f32 0.0, %v575
      %v577 = vpop.f32.mrb[0].mxu0
      %578 = vmatprep.mubr.bf16.mxu0 0
      %579 = vmatmul.mubr.bf16.gmra.mrb[0].mxu0 %v486
      %v580 = vpop.f32.mrb[0].mxu0
      %v581 = vadd.f32 0.0, %v580
      %v582 = vpop.f32.mrb[0].mxu0
      %v583 = vpop.f32.mrb[0].mxu0
      %v584 = vadd.f32 0.0, %v583
      %v585 = vpop.f32.mrb[0].mxu0
      %586 = vmatprep.mubr.bf16.mxu0 0
      %587 = vmatmul.mubr.bf16.gmra.mrb[0].mxu0 %v489
      %v588 = vpop.f32.mrb[0].mxu0
      %v589 = vadd.f32 0.0, %v588
      %v590 = vpop.f32.mrb[0].mxu0
      %v591 = vpop.f32.mrb[0].mxu0
      %v592 = vadd.f32 0.0, %v591
      %v593 = vpop.f32.mrb[0].mxu0
      %594 = vmatprep.mubr.bf16.mxu0 0
      %595 = vmatmul.mubr.bf16.gmra.mrb[0].mxu0 %v492
      %v596 = vpop.f32.mrb[0].mxu0
      %v597 = vadd.f32 0.0, %v596
      %v598 = vpop.f32.mrb[0].mxu0
      %v599 = vpop.f32.mrb[0].mxu0
      %v600 = vadd.f32 0.0, %v599
      %v601 = vpop.f32.mrb[0].mxu0
      %602 = vmatprep.mubr.bf16.mxu0 0
      %603 = vmatmul.mubr.bf16.gmra.mrb[0].mxu0 %v495
      %v604 = vpop.f32.mrb[0].mxu0
      %v605 = vadd.f32 0.0, %v604
      %v606 = vpop.f32.mrb[0].mxu0
      %v607 = vpop.f32.mrb[0].mxu0
      %v608 = vadd.f32 0.0, %v607
      %v609 = vpop.f32.mrb[0].mxu0
      %610 = vmatprep.mubr.bf16.mxu0 0
      %611 = vmatmul.mubr.bf16.gmra.mrb[0].mxu0 %v498
      %v612 = vpop.f32.mrb[0].mxu0
      %v613 = vadd.f32 0.0, %v612
      %v614 = vpop.f32.mrb[0].mxu0
      %v615 = vpop.f32.mrb[0].mxu0
      %v616 = vadd.f32 0.0, %v615
      %v617 = vpop.f32.mrb[0].mxu0
      %618 = vmatprep.mubr.bf16.mxu0 0
      %619 = vmatmul.mubr.bf16.gmra.mrb[0].mxu0 %v501
      %v620 = vpop.f32.mrb[0].mxu0
      %v621 = vadd.f32 0.0, %v620
      %v622 = vpop.f32.mrb[0].mxu0
      %v623 = vpop.f32.mrb[0].mxu0
      %v624 = vadd.f32 0.0, %v623
      %v625 = vpop.f32.mrb[0].mxu0
      %626 = vmatprep.mubr.bf16.mxu0 0
      %627 = vmatmul.mubr.bf16.gmra.mrb[0].mxu0 %v504
      %v628 = vpop.f32.mrb[0].mxu0
      %v629 = vadd.f32 0.0, %v628
      %v630 = vpop.f32.mrb[0].mxu0
      %v631 = vpop.f32.mrb[0].mxu0
      %v632 = vadd.f32 0.0, %v631
      %v633 = vpop.f32.mrb[0].mxu0
      %634 = vmatprep.mubr.bf16.mxu0 0
      %635 = vmatmul.mubr.bf16.gmra.mrb[0].mxu0 %v507
      %v636 = vpop.f32.mrb[0].mxu0
      %v637 = vadd.f32 0.0, %v636
      %v638 = vpop.f32.mrb[0].mxu0
      %v639 = vpop.f32.mrb[0].mxu0
      %v640 = vadd.f32 0.0, %v639
      %v641 = vpop.f32.mrb[0].mxu0
      %642 = vmatprep.mubr.bf16.mxu0 0
      %643 = vmatmul.mubr.bf16.gmra.mrb[0].mxu0 %v510
      %v644 = vpop.f32.mrb[0].mxu0
      %v645 = vadd.f32 0.0, %v644
      %v646 = vpop.f32.mrb[0].mxu0
      %v647 = vpop.f32.mrb[0].mxu0
      %v648 = vadd.f32 0.0, %v647
      %v649 = vpop.f32.mrb[0].mxu0
      %650 = vmatprep.mubr.bf16.mxu0 0
      %651 = vmatmul.mubr.bf16.gmra.mrb[0].mxu0 %v513
      %v652 = vpop.f32.mrb[0].mxu0
      %v653 = vadd.f32 0.0, %v652
      %v654 = vpop.f32.mrb[0].mxu0
      %v655 = vpop.f32.mrb[0].mxu0
      %v656 = vadd.f32 0.0, %v655
      %v657 = vpop.f32.mrb[0].mxu0
      %658 = vmatprep.mubr.bf16.mxu0 0
      %659 = vmatmul.mubr.bf16.gmra.mrb[0].mxu0 %v516
      %v660 = vpop.f32.mrb[0].mxu0
      %v661 = vadd.f32 0.0, %v660
      %v662 = vpop.f32.mrb[0].mxu0
      %v663 = vpop.f32.mrb[0].mxu0
      %v664 = vadd.f32 0.0, %v663
      %v665 = vpop.f32.mrb[0].mxu0
      %666 = vdwg.mxu0
      %v667 = vsel %vm475, %v339, 0
      %v669 = vsel %vm475, %v340, 0
      %v671 = vsel %vm475, %v341, 0
      %v673 = vsel %vm475, %v342, 0
      %v675 = vsel %vm475, %v343, 0
      %v677 = vsel %vm475, %v344, 0
      %v679 = vsel %vm475, %v345, 0
      %v681 = vsel %vm475, %v346, 0
      %v683 = vsel %vm475, %v347, 0
      %v685 = vsel %vm475, %v348, 0
      %v687 = vsel %vm475, %v349, 0
      %v689 = vsel %vm475, %v350, 0
      %v691 = vsel %vm475, %v351, 0
      %v693 = vsel %vm475, %v352, 0
      %v696 = vsel %vm518, %v279, 0
      %698 = vmatprep.subr.bf16.mxu0 0
      %699 = vmatpush1.bf16.msra.mxu0 %v696
      %700 = vmatprep.subr.bf16.mxu0 0
      %701 = vmatpush1.bf16.msra.mxu0 0
      %702 = vmatprep.subr.bf16.mxu0 0
      %703 = vmatpush1.bf16.msra.mxu0 0
      %704 = vmatprep.subr.bf16.mxu0 0
      %705 = vmatpush1.bf16.msra.mxu0 0
      %706 = vmatprep.subr.bf16.mxu0 0
      %707 = vmatpush1.bf16.msra.mxu0 0
      %708 = vmatprep.subr.bf16.mxu0 0
      %709 = vmatpush1.bf16.msra.mxu0 0
      %710 = vmatprep.subr.bf16.mxu0 0
      %711 = vmatpush1.bf16.msra.mxu0 0
      %712 = vmatprep.subr.bf16.mxu0 0
      %713 = vmatpush1.bf16.msra.mxu0 0
      %714 = vmatprep.subr.bf16.mxu0 0
      %715 = vmatpush1.bf16.msra.mxu0 0
      %716 = vmatprep.subr.bf16.mxu0 0
      %717 = vmatpush1.bf16.msra.mxu0 0
      %718 = vmatprep.subr.bf16.mxu0 0
      %719 = vmatpush1.bf16.msra.mxu0 0
      %720 = vmatprep.subr.bf16.mxu0 0
      %721 = vmatpush1.bf16.msra.mxu0 0
      %722 = vmatprep.subr.bf16.mxu0 0
      %723 = vmatpush1.bf16.msra.mxu0 0
      %724 = vmatprep.subr.bf16.mxu0 0
      %725 = vmatpush1.bf16.msra.mxu0 0
      %726 = vmatprep.subr.bf16.mxu0 0
      %727 = vmatpush1.bf16.msra.mxu0 0
      %728 = vmatprep.subr.bf16.mxu0 0
      %729 = vmatpush1.bf16.msra.mxu0 0
      %730 = vmatprep.mubr.bf16.mxu0 0
      %731 = vmatmul.mubr.bf16.gmra.mrb[0].mxu0 %v667
      %v732 = vpop.f32.mrb[0].mxu0
      %v733 = vadd.f32 %v557, %v732
      %v734 = vpop.f32.mrb[0].mxu0
      %v735 = vpop.f32.mrb[0].mxu0
      %v736 = vadd.f32 %v560, %v735
      %v737 = vpop.f32.mrb[0].mxu0
      %738 = vmatprep.mubr.bf16.mxu0 0
      %739 = vmatmul.mubr.bf16.gmra.mrb[0].mxu0 %v669
      %v740 = vpop.f32.mrb[0].mxu0
      %v741 = vadd.f32 %v565, %v740
      %v742 = vpop.f32.mrb[0].mxu0
      %v743 = vpop.f32.mrb[0].mxu0
      %v744 = vadd.f32 %v568, %v743
      %v745 = vpop.f32.mrb[0].mxu0
      %746 = vmatprep.mubr.bf16.mxu0 0
      %747 = vmatmul.mubr.bf16.gmra.mrb[0].mxu0 %v671
      %v748 = vpop.f32.mrb[0].mxu0
      %v749 = vadd.f32 %v573, %v748
      %v750 = vpop.f32.mrb[0].mxu0
      %v751 = vpop.f32.mrb[0].mxu0
      %v752 = vadd.f32 %v576, %v751
      %v753 = vpop.f32.mrb[0].mxu0
      %754 = vmatprep.mubr.bf16.mxu0 0
      %755 = vmatmul.mubr.bf16.gmra.mrb[0].mxu0 %v673
      %v756 = vpop.f32.mrb[0].mxu0
      %v757 = vadd.f32 %v581, %v756
      %v758 = vpop.f32.mrb[0].mxu0
      %v759 = vpop.f32.mrb[0].mxu0
      %v760 = vadd.f32 %v584, %v759
      %v761 = vpop.f32.mrb[0].mxu0
      %762 = vmatprep.mubr.bf16.mxu0 0
      %763 = vmatmul.mubr.bf16.gmra.mrb[0].mxu0 %v675
      %v764 = vpop.f32.mrb[0].mxu0
      %v765 = vadd.f32 %v589, %v764
      %v766 = vpop.f32.mrb[0].mxu0
      %v767 = vpop.f32.mrb[0].mxu0
      %v768 = vadd.f32 %v592, %v767
      %v769 = vpop.f32.mrb[0].mxu0
      %770 = vmatprep.mubr.bf16.mxu0 0
      %771 = vmatmul.mubr.bf16.gmra.mrb[0].mxu0 %v677
      %v772 = vpop.f32.mrb[0].mxu0
      %v773 = vadd.f32 %v597, %v772
      %v774 = vpop.f32.mrb[0].mxu0
      %v775 = vpop.f32.mrb[0].mxu0
      %v776 = vadd.f32 %v600, %v775
      %v777 = vpop.f32.mrb[0].mxu0
      %778 = vmatprep.mubr.bf16.mxu0 0
      %779 = vmatmul.mubr.bf16.gmra.mrb[0].mxu0 %v679
      %v780 = vpop.f32.mrb[0].mxu0
      %v781 = vadd.f32 %v605, %v780
      %v782 = vpop.f32.mrb[0].mxu0
      %v783 = vpop.f32.mrb[0].mxu0
      %v784 = vadd.f32 %v608, %v783
      %v785 = vpop.f32.mrb[0].mxu0
      %786 = vmatprep.mubr.bf16.mxu0 0
      %787 = vmatmul.mubr.bf16.gmra.mrb[0].mxu0 %v681
      %v788 = vpop.f32.mrb[0].mxu0
      %v789 = vadd.f32 %v613, %v788
      %v790 = vpop.f32.mrb[0].mxu0
      %v791 = vpop.f32.mrb[0].mxu0
      %v792 = vadd.f32 %v616, %v791
      %v793 = vpop.f32.mrb[0].mxu0
      %794 = vmatprep.mubr.bf16.mxu0 0
      %795 = vmatmul.mubr.bf16.gmra.mrb[0].mxu0 %v683
      %v796 = vpop.f32.mrb[0].mxu0
      %v797 = vadd.f32 %v621, %v796
      %v798 = vpop.f32.mrb[0].mxu0
      %v799 = vpop.f32.mrb[0].mxu0
      %v800 = vadd.f32 %v624, %v799
      %v801 = vpop.f32.mrb[0].mxu0
      %802 = vmatprep.mubr.bf16.mxu0 0
      %803 = vmatmul.mubr.bf16.gmra.mrb[0].mxu0 %v685
      %v804 = vpop.f32.mrb[0].mxu0
      %v805 = vadd.f32 %v629, %v804
      %v806 = vpop.f32.mrb[0].mxu0
      %v807 = vpop.f32.mrb[0].mxu0
      %v808 = vadd.f32 %v632, %v807
      %v809 = vpop.f32.mrb[0].mxu0
      %810 = vmatprep.mubr.bf16.mxu0 0
      %811 = vmatmul.mubr.bf16.gmra.mrb[0].mxu0 %v687
      %v812 = vpop.f32.mrb[0].mxu0
      %v813 = vadd.f32 %v637, %v812
      %v814 = vpop.f32.mrb[0].mxu0
      %v815 = vpop.f32.mrb[0].mxu0
      %v816 = vadd.f32 %v640, %v815
      %v817 = vpop.f32.mrb[0].mxu0
      %818 = vmatprep.mubr.bf16.mxu0 0
      %819 = vmatmul.mubr.bf16.gmra.mrb[0].mxu0 %v689
      %v820 = vpop.f32.mrb[0].mxu0
      %v821 = vadd.f32 %v645, %v820
      %v822 = vpop.f32.mrb[0].mxu0
      %v823 = vpop.f32.mrb[0].mxu0
      %v824 = vadd.f32 %v648, %v823
      %v825 = vpop.f32.mrb[0].mxu0
      %826 = vmatprep.mubr.bf16.mxu0 0
      %827 = vmatmul.mubr.bf16.gmra.mrb[0].mxu0 %v691
      %v828 = vpop.f32.mrb[0].mxu0
      %v829 = vadd.f32 %v653, %v828
      %v830 = vpop.f32.mrb[0].mxu0
      %v831 = vpop.f32.mrb[0].mxu0
      %v832 = vadd.f32 %v656, %v831
      %v833 = vpop.f32.mrb[0].mxu0
      %834 = vmatprep.mubr.bf16.mxu0 0
      %835 = vmatmul.mubr.bf16.gmra.mrb[0].mxu0 %v693
      %v836 = vpop.f32.mrb[0].mxu0
      %v837 = vadd.f32 %v661, %v836
      %v838 = vpop.f32.mrb[0].mxu0
      %v839 = vpop.f32.mrb[0].mxu0
      %v840 = vadd.f32 %v664, %v839
      %v841 = vpop.f32.mrb[0].mxu0
      %842 = vdwg.mxu0
      %v843 = vld [vmem:[%s223 + $0x4] sm:$0x3]
      %vm844 = vcmask 1046528
      %v845 = vrot.slane %v339, 1
      %v846 = vrot.slane %v340, 1
      %v847 = vsel %vm844, %v845, %v846
      %v848 = vrot.slane %v341, 1
      %v849 = vsel %vm844, %v846, %v848
      %v850 = vrot.slane %v342, 1
      %v851 = vsel %vm844, %v848, %v850
      %v852 = vrot.slane %v343, 1
      %v853 = vsel %vm844, %v850, %v852
      %v854 = vrot.slane %v344, 1
      %v855 = vsel %vm844, %v852, %v854
      %v856 = vrot.slane %v345, 1
      %v857 = vsel %vm844, %v854, %v856
      %v858 = vrot.slane %v346, 1
      %v859 = vsel %vm844, %v856, %v858
      %v860 = vrot.slane %v347, 1
      %v861 = vsel %vm844, %v858, %v860
      %v862 = vrot.slane %v348, 1
      %v863 = vsel %vm844, %v860, %v862
      %v864 = vrot.slane %v349, 1
      %v865 = vsel %vm844, %v862, %v864
      %v866 = vrot.slane %v350, 1
      %v867 = vsel %vm844, %v864, %v866
      %v868 = vrot.slane %v351, 1
      %v869 = vsel %vm844, %v866, %v868
      %v870 = vrot.slane %v352, 1
      %v871 = vsel %vm844, %v868, %v870
      %v872 = vrot.slane %v353, 1
      %v873 = vsel %vm844, %v870, %v872
      %v875 = vsel %vm475, %v847, 0
      %v878 = vsel %vm475, %v849, 0
      %v881 = vsel %vm475, %v851, 0
      %v884 = vsel %vm475, %v853, 0
      %v887 = vsel %vm475, %v855, 0
      %v890 = vsel %vm475, %v857, 0
      %v893 = vsel %vm475, %v859, 0
      %v896 = vsel %vm475, %v861, 0
      %v899 = vsel %vm475, %v863, 0
      %v902 = vsel %vm475, %v865, 0
      %v905 = vsel %vm475, %v867, 0
      %v908 = vsel %vm475, %v869, 0
      %v911 = vsel %vm475, %v871, 0
      %v914 = vsel %vm475, %v873, 0
      %v917 = vsel %vm518, %v843, 0
      %919 = vmatprep.subr.bf16.mxu0 0
      %920 = vmatpush1.bf16.msra.mxu0 %v917
      %921 = vmatprep.subr.bf16.mxu0 0
      %922 = vmatpush1.bf16.msra.mxu0 0
      %923 = vmatprep.subr.bf16.mxu0 0
      %924 = vmatpush1.bf16.msra.mxu0 0
      %925 = vmatprep.subr.bf16.mxu0 0
      %926 = vmatpush1.bf16.msra.mxu0 0
      %927 = vmatprep.subr.bf16.mxu0 0
      %928 = vmatpush1.bf16.msra.mxu0 0
      %929 = vmatprep.subr.bf16.mxu0 0
      %930 = vmatpush1.bf16.msra.mxu0 0
      %931 = vmatprep.subr.bf16.mxu0 0
      %932 = vmatpush1.bf16.msra.mxu0 0
      %933 = vmatprep.subr.bf16.mxu0 0
      %934 = vmatpush1.bf16.msra.mxu0 0
      %935 = vmatprep.subr.bf16.mxu0 0
      %936 = vmatpush1.bf16.msra.mxu0 0
      %937 = vmatprep.subr.bf16.mxu0 0
      %938 = vmatpush1.bf16.msra.mxu0 0
      %939 = vmatprep.subr.bf16.mxu0 0
      %940 = vmatpush1.bf16.msra.mxu0 0
      %941 = vmatprep.subr.bf16.mxu0 0
      %942 = vmatpush1.bf16.msra.mxu0 0
      %943 = vmatprep.subr.bf16.mxu0 0
      %944 = vmatpush1.bf16.msra.mxu0 0
      %945 = vmatprep.subr.bf16.mxu0 0
      %946 = vmatpush1.bf16.msra.mxu0 0
      %947 = vmatprep.subr.bf16.mxu0 0
      %948 = vmatpush1.bf16.msra.mxu0 0
      %949 = vmatprep.subr.bf16.mxu0 0
      %950 = vmatpush1.bf16.msra.mxu0 0
      %951 = vmatprep.mubr.bf16.mxu0 0
      %952 = vmatmul.mubr.bf16.gmra.mrb[0].mxu0 %v875
      %v953 = vpop.f32.mrb[0].mxu0
      %v954 = vadd.f32 0.0, %v953
      %v955 = vpop.f32.mrb[0].mxu0
      %v956 = vpop.f32.mrb[0].mxu0
      %v957 = vadd.f32 0.0, %v956
      %v958 = vpop.f32.mrb[0].mxu0
      %959 = vmatprep.mubr.bf16.mxu0 0
      %960 = vmatmul.mubr.bf16.gmra.mrb[0].mxu0 %v878
      %v961 = vpop.f32.mrb[0].mxu0
      %v962 = vadd.f32 0.0, %v961
      %v963 = vpop.f32.mrb[0].mxu0
      %v964 = vpop.f32.mrb[0].mxu0
      %v965 = vadd.f32 0.0, %v964
      %v966 = vpop.f32.mrb[0].mxu0
      %967 = vmatprep.mubr.bf16.mxu0 0
      %968 = vmatmul.mubr.bf16.gmra.mrb[0].mxu0 %v881
      %v969 = vpop.f32.mrb[0].mxu0
      %v970 = vadd.f32 0.0, %v969
      %v971 = vpop.f32.mrb[0].mxu0
      %v972 = vpop.f32.mrb[0].mxu0
      %v973 = vadd.f32 0.0, %v972
      %v974 = vpop.f32.mrb[0].mxu0
      %975 = vmatprep.mubr.bf16.mxu0 0
      %976 = vmatmul.mubr.bf16.gmra.mrb[0].mxu0 %v884
      %v977 = vpop.f32.mrb[0].mxu0
      %v978 = vadd.f32 0.0, %v977
      %v979 = vpop.f32.mrb[0].mxu0
      %v980 = vpop.f32.mrb[0].mxu0
      %v981 = vadd.f32 0.0, %v980
      %v982 = vpop.f32.mrb[0].mxu0
      %983 = vmatprep.mubr.bf16.mxu0 0
      %984 = vmatmul.mubr.bf16.gmra.mrb[0].mxu0 %v887
      %v985 = vpop.f32.mrb[0].mxu0
      %v986 = vadd.f32 0.0, %v985
      %v987 = vpop.f32.mrb[0].mxu0
      %v988 = vpop.f32.mrb[0].mxu0
      %v989 = vadd.f32 0.0, %v988
      %v990 = vpop.f32.mrb[0].mxu0
      %991 = vmatprep.mubr.bf16.mxu0 0
      %992 = vmatmul.mubr.bf16.gmra.mrb[0].mxu0 %v890
      %v993 = vpop.f32.mrb[0].mxu0
      %v994 = vadd.f32 0.0, %v993
      %v995 = vpop.f32.mrb[0].mxu0
      %v996 = vpop.f32.mrb[0].mxu0
      %v997 = vadd.f32 0.0, %v996
      %v998 = vpop.f32.mrb[0].mxu0
      %999 = vmatprep.mubr.bf16.mxu0 0
      %1000 = vmatmul.mubr.bf16.gmra.mrb[0].mxu0 %v893
      %v1001 = vpop.f32.mrb[0].mxu0
      %v1002 = vadd.f32 0.0, %v1001
      %v1003 = vpop.f32.mrb[0].mxu0
      %v1004 = vpop.f32.mrb[0].mxu0
      %v1005 = vadd.f32 0.0, %v1004
      %v1006 = vpop.f32.mrb[0].mxu0
      %1007 = vmatprep.mubr.bf16.mxu0 0
      %1008 = vmatmul.mubr.bf16.gmra.mrb[0].mxu0 %v896
      %v1009 = vpop.f32.mrb[0].mxu0
      %v1010 = vadd.f32 0.0, %v1009
      %v1011 = vpop.f32.mrb[0].mxu0
      %v1012 = vpop.f32.mrb[0].mxu0
      %v1013 = vadd.f32 0.0, %v1012
      %v1014 = vpop.f32.mrb[0].mxu0
      %1015 = vmatprep.mubr.bf16.mxu0 0
      %1016 = vmatmul.mubr.bf16.gmra.mrb[0].mxu0 %v899
      %v1017 = vpop.f32.mrb[0].mxu0
      %v1018 = vadd.f32 0.0, %v1017
      %v1019 = vpop.f32.mrb[0].mxu0
      %v1020 = vpop.f32.mrb[0].mxu0
      %v1021 = vadd.f32 0.0, %v1020
      %v1022 = vpop.f32.mrb[0].mxu0
      %1023 = vmatprep.mubr.bf16.mxu0 0
      %1024 = vmatmul.mubr.bf16.gmra.mrb[0].mxu0 %v902
      %v1025 = vpop.f32.mrb[0].mxu0
      %v1026 = vadd.f32 0.0, %v1025
      %v1027 = vpop.f32.mrb[0].mxu0
      %v1028 = vpop.f32.mrb[0].mxu0
      %v1029 = vadd.f32 0.0, %v1028
      %v1030 = vpop.f32.mrb[0].mxu0
      %1031 = vmatprep.mubr.bf16.mxu0 0
      %1032 = vmatmul.mubr.bf16.gmra.mrb[0].mxu0 %v905
      %v1033 = vpop.f32.mrb[0].mxu0
      %v1034 = vadd.f32 0.0, %v1033
      %v1035 = vpop.f32.mrb[0].mxu0
      %v1036 = vpop.f32.mrb[0].mxu0
      %v1037 = vadd.f32 0.0, %v1036
      %v1038 = vpop.f32.mrb[0].mxu0
      %1039 = vmatprep.mubr.bf16.mxu0 0
      %1040 = vmatmul.mubr.bf16.gmra.mrb[0].mxu0 %v908
      %v1041 = vpop.f32.mrb[0].mxu0
      %v1042 = vadd.f32 0.0, %v1041
      %v1043 = vpop.f32.mrb[0].mxu0
      %v1044 = vpop.f32.mrb[0].mxu0
      %v1045 = vadd.f32 0.0, %v1044
      %v1046 = vpop.f32.mrb[0].mxu0
      %1047 = vmatprep.mubr.bf16.mxu0 0
      %1048 = vmatmul.mubr.bf16.gmra.mrb[0].mxu0 %v911
      %v1049 = vpop.f32.mrb[0].mxu0
      %v1050 = vadd.f32 0.0, %v1049
      %v1051 = vpop.f32.mrb[0].mxu0
      %v1052 = vpop.f32.mrb[0].mxu0
      %v1053 = vadd.f32 0.0, %v1052
      %v1054 = vpop.f32.mrb[0].mxu0
      %1055 = vmatprep.mubr.bf16.mxu0 0
      %1056 = vmatmul.mubr.bf16.gmra.mrb[0].mxu0 %v914
      %v1057 = vpop.f32.mrb[0].mxu0
      %v1058 = vadd.f32 0.0, %v1057
      %v1059 = vpop.f32.mrb[0].mxu0
      %v1060 = vpop.f32.mrb[0].mxu0
      %v1061 = vadd.f32 0.0, %v1060
      %v1062 = vpop.f32.mrb[0].mxu0
      %1063 = vdwg.mxu0
      %v1064 = vadd.f32 %v733, %v954
      %v1065 = vadd.f32 %v736, %v957
      %v1066 = vadd.f32 %v741, %v962
      %v1067 = vadd.f32 %v744, %v965
      %v1068 = vadd.f32 %v749, %v970
      %v1069 = vadd.f32 %v752, %v973
      %v1070 = vadd.f32 %v757, %v978
      %v1071 = vadd.f32 %v760, %v981
      %v1072 = vadd.f32 %v765, %v986
      %v1073 = vadd.f32 %v768, %v989
      %v1074 = vadd.f32 %v773, %v994
      %v1075 = vadd.f32 %v776, %v997
      %v1076 = vadd.f32 %v781, %v1002
      %v1077 = vadd.f32 %v784, %v1005
      %v1078 = vadd.f32 %v789, %v1010
      %v1079 = vadd.f32 %v792, %v1013
      %v1080 = vadd.f32 %v797, %v1018
      %v1081 = vadd.f32 %v800, %v1021
      %v1082 = vadd.f32 %v805, %v1026
      %v1083 = vadd.f32 %v808, %v1029
      %v1084 = vadd.f32 %v813, %v1034
      %v1085 = vadd.f32 %v816, %v1037
      %v1086 = vadd.f32 %v821, %v1042
      %v1087 = vadd.f32 %v824, %v1045
      %v1088 = vadd.f32 %v829, %v1050
      %v1089 = vadd.f32 %v832, %v1053
      %v1090 = vadd.f32 %v837, %v1058
      %v1091 = vadd.f32 %v840, %v1061
      %v1092 = vld [vmem:[%s223 + $0x4] sm:$0xc]
      %v1094 = vunpack.c.l.b16 %v275
      %v1095 = vpack.c.b16 %v1094, %v338
      %v1097 = vunpack.c.l.b16 %v1092
      %v1098 = vpack.c.b16 %v1097, %v1097
      %v1099 = vrot.slane %v1098, 2
      %v1101 = vsel %vm475, %v1095, 0
      %v1104 = vsel %vm518, %v1099, 0
      %1106 = vmatprep.subr.bf16.mxu0 0
      %1107 = vmatpush1.bf16.msra.mxu0 %v1104
      %1108 = vmatprep.subr.bf16.mxu0 0
      %1109 = vmatpush1.bf16.msra.mxu0 0
      %1110 = vmatprep.subr.bf16.mxu0 0
      %1111 = vmatpush1.bf16.msra.mxu0 0
      %1112 = vmatprep.subr.bf16.mxu0 0
      %1113 = vmatpush1.bf16.msra.mxu0 0
      %1114 = vmatprep.subr.bf16.mxu0 0
      %1115 = vmatpush1.bf16.msra.mxu0 0
      %1116 = vmatprep.subr.bf16.mxu0 0
      %1117 = vmatpush1.bf16.msra.mxu0 0
      %1118 = vmatprep.subr.bf16.mxu0 0
      %1119 = vmatpush1.bf16.msra.mxu0 0
      %1120 = vmatprep.subr.bf16.mxu0 0
      %1121 = vmatpush1.bf16.msra.mxu0 0
      %1122 = vmatprep.subr.bf16.mxu0 0
      %1123 = vmatpush1.bf16.msra.mxu0 0
      %1124 = vmatprep.subr.bf16.mxu0 0
      %1125 = vmatpush1.bf16.msra.mxu0 0
      %1126 = vmatprep.subr.bf16.mxu0 0
      %1127 = vmatpush1.bf16.msra.mxu0 0
      %1128 = vmatprep.subr.bf16.mxu0 0
      %1129 = vmatpush1.bf16.msra.mxu0 0
      %1130 = vmatprep.subr.bf16.mxu0 0
      %1131 = vmatpush1.bf16.msra.mxu0 0
      %1132 = vmatprep.subr.bf16.mxu0 0
      %1133 = vmatpush1.bf16.msra.mxu0 0
      %1134 = vmatprep.subr.bf16.mxu0 0
      %1135 = vmatpush1.bf16.msra.mxu0 0
      %1136 = vmatprep.subr.bf16.mxu0 0
      %1137 = vmatpush1.bf16.msra.mxu0 0
      %1138 = vmatprep.mubr.bf16.mxu0 0
      %1139 = vmatmul.mubr.bf16.gmra.mrb[0].mxu0 %v669
      %v1140 = vpop.f32.mrb[0].mxu0
      %v1141 = vadd.f32 0.0, %v1140
      %v1142 = vpop.f32.mrb[0].mxu0
      %v1143 = vpop.f32.mrb[0].mxu0
      %v1144 = vadd.f32 0.0, %v1143
      %v1145 = vpop.f32.mrb[0].mxu0
      %1146 = vmatprep.mubr.bf16.mxu0 0
      %1147 = vmatmul.mubr.bf16.gmra.mrb[0].mxu0 %v671
      %v1148 = vpop.f32.mrb[0].mxu0
      %v1149 = vadd.f32 0.0, %v1148
      %v1150 = vpop.f32.mrb[0].mxu0
      %v1151 = vpop.f32.mrb[0].mxu0
      %v1152 = vadd.f32 0.0, %v1151
      %v1153 = vpop.f32.mrb[0].mxu0
      %1154 = vmatprep.mubr.bf16.mxu0 0
      %1155 = vmatmul.mubr.bf16.gmra.mrb[0].mxu0 %v673
      %v1156 = vpop.f32.mrb[0].mxu0
      %v1157 = vadd.f32 0.0, %v1156
      %v1158 = vpop.f32.mrb[0].mxu0
      %v1159 = vpop.f32.mrb[0].mxu0
      %v1160 = vadd.f32 0.0, %v1159
      %v1161 = vpop.f32.mrb[0].mxu0
      %1162 = vmatprep.mubr.bf16.mxu0 0
      %1163 = vmatmul.mubr.bf16.gmra.mrb[0].mxu0 %v675
      %v1164 = vpop.f32.mrb[0].mxu0
      %v1165 = vadd.f32 0.0, %v1164
      %v1166 = vpop.f32.mrb[0].mxu0
      %v1167 = vpop.f32.mrb[0].mxu0
      %v1168 = vadd.f32 0.0, %v1167
      %v1169 = vpop.f32.mrb[0].mxu0
      %1170 = vmatprep.mubr.bf16.mxu0 0
      %1171 = vmatmul.mubr.bf16.gmra.mrb[0].mxu0 %v677
      %v1172 = vpop.f32.mrb[0].mxu0
      %v1173 = vadd.f32 0.0, %v1172
      %v1174 = vpop.f32.mrb[0].mxu0
      %v1175 = vpop.f32.mrb[0].mxu0
      %v1176 = vadd.f32 0.0, %v1175
      %v1177 = vpop.f32.mrb[0].mxu0
      %1178 = vmatprep.mubr.bf16.mxu0 0
      %1179 = vmatmul.mubr.bf16.gmra.mrb[0].mxu0 %v679
      %v1180 = vpop.f32.mrb[0].mxu0
      %v1181 = vadd.f32 0.0, %v1180
      %v1182 = vpop.f32.mrb[0].mxu0
      %v1183 = vpop.f32.mrb[0].mxu0
      %v1184 = vadd.f32 0.0, %v1183
      %v1185 = vpop.f32.mrb[0].mxu0
      %1186 = vmatprep.mubr.bf16.mxu0 0
      %1187 = vmatmul.mubr.bf16.gmra.mrb[0].mxu0 %v681
      %v1188 = vpop.f32.mrb[0].mxu0
      %v1189 = vadd.f32 0.0, %v1188
      %v1190 = vpop.f32.mrb[0].mxu0
      %v1191 = vpop.f32.mrb[0].mxu0
      %v1192 = vadd.f32 0.0, %v1191
      %v1193 = vpop.f32.mrb[0].mxu0
      %1194 = vmatprep.mubr.bf16.mxu0 0
      %1195 = vmatmul.mubr.bf16.gmra.mrb[0].mxu0 %v683
      %v1196 = vpop.f32.mrb[0].mxu0
      %v1197 = vadd.f32 0.0, %v1196
      %v1198 = vpop.f32.mrb[0].mxu0
      %v1199 = vpop.f32.mrb[0].mxu0
      %v1200 = vadd.f32 0.0, %v1199
      %v1201 = vpop.f32.mrb[0].mxu0
      %1202 = vmatprep.mubr.bf16.mxu0 0
      %1203 = vmatmul.mubr.bf16.gmra.mrb[0].mxu0 %v685
      %v1204 = vpop.f32.mrb[0].mxu0
      %v1205 = vadd.f32 0.0, %v1204
      %v1206 = vpop.f32.mrb[0].mxu0
      %v1207 = vpop.f32.mrb[0].mxu0
      %v1208 = vadd.f32 0.0, %v1207
      %v1209 = vpop.f32.mrb[0].mxu0
      %1210 = vmatprep.mubr.bf16.mxu0 0
      %1211 = vmatmul.mubr.bf16.gmra.mrb[0].mxu0 %v687
      %v1212 = vpop.f32.mrb[0].mxu0
      %v1213 = vadd.f32 0.0, %v1212
      %v1214 = vpop.f32.mrb[0].mxu0
      %v1215 = vpop.f32.mrb[0].mxu0
      %v1216 = vadd.f32 0.0, %v1215
      %v1217 = vpop.f32.mrb[0].mxu0
      %1218 = vmatprep.mubr.bf16.mxu0 0
      %1219 = vmatmul.mubr.bf16.gmra.mrb[0].mxu0 %v689
      %v1220 = vpop.f32.mrb[0].mxu0
      %v1221 = vadd.f32 0.0, %v1220
      %v1222 = vpop.f32.mrb[0].mxu0
      %v1223 = vpop.f32.mrb[0].mxu0
      %v1224 = vadd.f32 0.0, %v1223
      %v1225 = vpop.f32.mrb[0].mxu0
      %1226 = vmatprep.mubr.bf16.mxu0 0
      %1227 = vmatmul.mubr.bf16.gmra.mrb[0].mxu0 %v691
      %v1228 = vpop.f32.mrb[0].mxu0
      %v1229 = vadd.f32 0.0, %v1228
      %v1230 = vpop.f32.mrb[0].mxu0
      %v1231 = vpop.f32.mrb[0].mxu0
      %v1232 = vadd.f32 0.0, %v1231
      %v1233 = vpop.f32.mrb[0].mxu0
      %1234 = vmatprep.mubr.bf16.mxu0 0
      %1235 = vmatmul.mubr.bf16.gmra.mrb[0].mxu0 %v693
      %v1236 = vpop.f32.mrb[0].mxu0
      %v1237 = vadd.f32 0.0, %v1236
      %v1238 = vpop.f32.mrb[0].mxu0
      %v1239 = vpop.f32.mrb[0].mxu0
      %v1240 = vadd.f32 0.0, %v1239
      %v1241 = vpop.f32.mrb[0].mxu0
      %1242 = vmatprep.mubr.bf16.mxu0 0
      %1243 = vmatmul.mubr.bf16.gmra.mrb[0].mxu0 %v1101
      %v1244 = vpop.f32.mrb[0].mxu0
      %v1245 = vadd.f32 0.0, %v1244
      %v1246 = vpop.f32.mrb[0].mxu0
      %v1247 = vpop.f32.mrb[0].mxu0
      %v1248 = vadd.f32 0.0, %v1247
      %v1249 = vpop.f32.mrb[0].mxu0
      %1250 = vdwg.mxu0
      %v1251 = vadd.f32 %v1064, %v1141
      %v1252 = vadd.f32 %v1065, %v1144
      %v1253 = vadd.f32 %v1066, %v1149
      %v1254 = vadd.f32 %v1067, %v1152
      %v1255 = vadd.f32 %v1068, %v1157
      %v1256 = vadd.f32 %v1069, %v1160
      %v1257 = vadd.f32 %v1070, %v1165
      %v1258 = vadd.f32 %v1071, %v1168
      %v1259 = vadd.f32 %v1072, %v1173
      %v1260 = vadd.f32 %v1073, %v1176
      %v1261 = vadd.f32 %v1074, %v1181
      %v1262 = vadd.f32 %v1075, %v1184
      %v1263 = vadd.f32 %v1076, %v1189
      %v1264 = vadd.f32 %v1077, %v1192
      %v1265 = vadd.f32 %v1078, %v1197
      %v1266 = vadd.f32 %v1079, %v1200
      %v1267 = vadd.f32 %v1080, %v1205
      %v1268 = vadd.f32 %v1081, %v1208
      %v1269 = vadd.f32 %v1082, %v1213
      %v1270 = vadd.f32 %v1083, %v1216
      %v1271 = vadd.f32 %v1084, %v1221
      %v1272 = vadd.f32 %v1085, %v1224
      %v1273 = vadd.f32 %v1086, %v1229
      %v1274 = vadd.f32 %v1087, %v1232
      %v1275 = vadd.f32 %v1088, %v1237
      %v1276 = vadd.f32 %v1089, %v1240
      %v1277 = vadd.f32 %v1090, %v1245
      %v1278 = vadd.f32 %v1091, %v1248
      %v1279 = vld [vmem:[%s223 + $0x8] sm:$0x3]
      %v1281 = vunpack.c.l.b16 %v276
      %v1282 = vpack.c.b16 %v1281, %v1281
      %v1283 = vshll.u32 %v1095, 16
      %v1285 = vrot.slane %v1283, 1
      %v1286 = vsel %vm354, %v465, %v1285
      %v1287 = vshrl.u32 %v1095, 16
      %v1289 = vor.u32 %v1287, %v1285
      %v1291 = vshll.u32 %v1282, 16
      %v1293 = vrot.slane %v1291, 1
      %v1294 = vsel %vm354, %v1289, %v1293
      %v1296 = vsel %vm475, %v1286, 0
      %v1299 = vsel %vm475, %v1294, 0
      %v1302 = vsel %vm518, %v1279, 0
      %1304 = vmatprep.subr.bf16.mxu0 0
      %1305 = vmatpush1.bf16.msra.mxu0 %v1302
      %1306 = vmatprep.subr.bf16.mxu0 0
      %1307 = vmatpush1.bf16.msra.mxu0 0
      %1308 = vmatprep.subr.bf16.mxu0 0
      %1309 = vmatpush1.bf16.msra.mxu0 0
      %1310 = vmatprep.subr.bf16.mxu0 0
      %1311 = vmatpush1.bf16.msra.mxu0 0
      %1312 = vmatprep.subr.bf16.mxu0 0
      %1313 = vmatpush1.bf16.msra.mxu0 0
      %1314 = vmatprep.subr.bf16.mxu0 0
      %1315 = vmatpush1.bf16.msra.mxu0 0
      %1316 = vmatprep.subr.bf16.mxu0 0
      %1317 = vmatpush1.bf16.msra.mxu0 0
      %1318 = vmatprep.subr.bf16.mxu0 0
      %1319 = vmatpush1.bf16.msra.mxu0 0
      %1320 = vmatprep.subr.bf16.mxu0 0
      %1321 = vmatpush1.bf16.msra.mxu0 0
      %1322 = vmatprep.subr.bf16.mxu0 0
      %1323 = vmatpush1.bf16.msra.mxu0 0
      %1324 = vmatprep.subr.bf16.mxu0 0
      %1325 = vmatpush1.bf16.msra.mxu0 0
      %1326 = vmatprep.subr.bf16.mxu0 0
      %1327 = vmatpush1.bf16.msra.mxu0 0
      %1328 = vmatprep.subr.bf16.mxu0 0
      %1329 = vmatpush1.bf16.msra.mxu0 0
      %1330 = vmatprep.subr.bf16.mxu0 0
      %1331 = vmatpush1.bf16.msra.mxu0 0
      %1332 = vmatprep.subr.bf16.mxu0 0
      %1333 = vmatpush1.bf16.msra.mxu0 0
      %1334 = vmatprep.subr.bf16.mxu0 0
      %1335 = vmatpush1.bf16.msra.mxu0 0
      %1336 = vmatprep.mubr.bf16.mxu0 0
      %1337 = vmatmul.mubr.bf16.gmra.mrb[0].mxu0 %v480
      %v1338 = vpop.f32.mrb[0].mxu0
      %v1339 = vadd.f32 0.0, %v1338
      %v1340 = vpop.f32.mrb[0].mxu0
      %v1341 = vpop.f32.mrb[0].mxu0
      %v1342 = vadd.f32 0.0, %v1341
      %v1343 = vpop.f32.mrb[0].mxu0
      %1344 = vmatprep.mubr.bf16.mxu0 0
      %1345 = vmatmul.mubr.bf16.gmra.mrb[0].mxu0 %v483
      %v1346 = vpop.f32.mrb[0].mxu0
      %v1347 = vadd.f32 0.0, %v1346
      %v1348 = vpop.f32.mrb[0].mxu0
      %v1349 = vpop.f32.mrb[0].mxu0
      %v1350 = vadd.f32 0.0, %v1349
      %v1351 = vpop.f32.mrb[0].mxu0
      %1352 = vmatprep.mubr.bf16.mxu0 0
      %1353 = vmatmul.mubr.bf16.gmra.mrb[0].mxu0 %v486
      %v1354 = vpop.f32.mrb[0].mxu0
      %v1355 = vadd.f32 0.0, %v1354
      %v1356 = vpop.f32.mrb[0].mxu0
      %v1357 = vpop.f32.mrb[0].mxu0
      %v1358 = vadd.f32 0.0, %v1357
      %v1359 = vpop.f32.mrb[0].mxu0
      %1360 = vmatprep.mubr.bf16.mxu0 0
      %1361 = vmatmul.mubr.bf16.gmra.mrb[0].mxu0 %v489
      %v1362 = vpop.f32.mrb[0].mxu0
      %v1363 = vadd.f32 0.0, %v1362
      %v1364 = vpop.f32.mrb[0].mxu0
      %v1365 = vpop.f32.mrb[0].mxu0
      %v1366 = vadd.f32 0.0, %v1365
      %v1367 = vpop.f32.mrb[0].mxu0
      %1368 = vmatprep.mubr.bf16.mxu0 0
      %1369 = vmatmul.mubr.bf16.gmra.mrb[0].mxu0 %v492
      %v1370 = vpop.f32.mrb[0].mxu0
      %v1371 = vadd.f32 0.0, %v1370
      %v1372 = vpop.f32.mrb[0].mxu0
      %v1373 = vpop.f32.mrb[0].mxu0
      %v1374 = vadd.f32 0.0, %v1373
      %v1375 = vpop.f32.mrb[0].mxu0
      %1376 = vmatprep.mubr.bf16.mxu0 0
      %1377 = vmatmul.mubr.bf16.gmra.mrb[0].mxu0 %v495
      %v1378 = vpop.f32.mrb[0].mxu0
      %v1379 = vadd.f32 0.0, %v1378
      %v1380 = vpop.f32.mrb[0].mxu0
      %v1381 = vpop.f32.mrb[0].mxu0
      %v1382 = vadd.f32 0.0, %v1381
      %v1383 = vpop.f32.mrb[0].mxu0
      %1384 = vmatprep.mubr.bf16.mxu0 0
      %1385 = vmatmul.mubr.bf16.gmra.mrb[0].mxu0 %v498
      %v1386 = vpop.f32.mrb[0].mxu0
      %v1387 = vadd.f32 0.0, %v1386
      %v1388 = vpop.f32.mrb[0].mxu0
      %v1389 = vpop.f32.mrb[0].mxu0
      %v1390 = vadd.f32 0.0, %v1389
      %v1391 = vpop.f32.mrb[0].mxu0
      %1392 = vmatprep.mubr.bf16.mxu0 0
      %1393 = vmatmul.mubr.bf16.gmra.mrb[0].mxu0 %v501
      %v1394 = vpop.f32.mrb[0].mxu0
      %v1395 = vadd.f32 0.0, %v1394
      %v1396 = vpop.f32.mrb[0].mxu0
      %v1397 = vpop.f32.mrb[0].mxu0
      %v1398 = vadd.f32 0.0, %v1397
      %v1399 = vpop.f32.mrb[0].mxu0
      %1400 = vmatprep.mubr.bf16.mxu0 0
      %1401 = vmatmul.mubr.bf16.gmra.mrb[0].mxu0 %v504
      %v1402 = vpop.f32.mrb[0].mxu0
      %v1403 = vadd.f32 0.0, %v1402
      %v1404 = vpop.f32.mrb[0].mxu0
      %v1405 = vpop.f32.mrb[0].mxu0
      %v1406 = vadd.f32 0.0, %v1405
      %v1407 = vpop.f32.mrb[0].mxu0
      %1408 = vmatprep.mubr.bf16.mxu0 0
      %1409 = vmatmul.mubr.bf16.gmra.mrb[0].mxu0 %v507
      %v1410 = vpop.f32.mrb[0].mxu0
      %v1411 = vadd.f32 0.0, %v1410
      %v1412 = vpop.f32.mrb[0].mxu0
      %v1413 = vpop.f32.mrb[0].mxu0
      %v1414 = vadd.f32 0.0, %v1413
      %v1415 = vpop.f32.mrb[0].mxu0
      %1416 = vmatprep.mubr.bf16.mxu0 0
      %1417 = vmatmul.mubr.bf16.gmra.mrb[0].mxu0 %v510
      %v1418 = vpop.f32.mrb[0].mxu0
      %v1419 = vadd.f32 0.0, %v1418
      %v1420 = vpop.f32.mrb[0].mxu0
      %v1421 = vpop.f32.mrb[0].mxu0
      %v1422 = vadd.f32 0.0, %v1421
      %v1423 = vpop.f32.mrb[0].mxu0
      %1424 = vmatprep.mubr.bf16.mxu0 0
      %1425 = vmatmul.mubr.bf16.gmra.mrb[0].mxu0 %v513
      %v1426 = vpop.f32.mrb[0].mxu0
      %v1427 = vadd.f32 0.0, %v1426
      %v1428 = vpop.f32.mrb[0].mxu0
      %v1429 = vpop.f32.mrb[0].mxu0
      %v1430 = vadd.f32 0.0, %v1429
      %v1431 = vpop.f32.mrb[0].mxu0
      %1432 = vmatprep.mubr.bf16.mxu0 0
      %1433 = vmatmul.mubr.bf16.gmra.mrb[0].mxu0 %v1296
      %v1434 = vpop.f32.mrb[0].mxu0
      %v1435 = vadd.f32 0.0, %v1434
      %v1436 = vpop.f32.mrb[0].mxu0
      %v1437 = vpop.f32.mrb[0].mxu0
      %v1438 = vadd.f32 0.0, %v1437
      %v1439 = vpop.f32.mrb[0].mxu0
      %1440 = vmatprep.mubr.bf16.mxu0 0
      %1441 = vmatmul.mubr.bf16.gmra.mrb[0].mxu0 %v1299
      %v1442 = vpop.f32.mrb[0].mxu0
      %v1443 = vadd.f32 0.0, %v1442
      %v1444 = vpop.f32.mrb[0].mxu0
      %v1445 = vpop.f32.mrb[0].mxu0
      %v1446 = vadd.f32 0.0, %v1445
      %v1447 = vpop.f32.mrb[0].mxu0
      %1448 = vdwg.mxu0
      %v1449 = vadd.f32 %v1251, %v1339
      %v1450 = vadd.f32 %v1252, %v1342
      %v1451 = vadd.f32 %v1253, %v1347
      %v1452 = vadd.f32 %v1254, %v1350
      %v1453 = vadd.f32 %v1255, %v1355
      %v1454 = vadd.f32 %v1256, %v1358
      %v1455 = vadd.f32 %v1257, %v1363
      %v1456 = vadd.f32 %v1258, %v1366
      %v1457 = vadd.f32 %v1259, %v1371
      %v1458 = vadd.f32 %v1260, %v1374
      %v1459 = vadd.f32 %v1261, %v1379
      %v1460 = vadd.f32 %v1262, %v1382
      %v1461 = vadd.f32 %v1263, %v1387
      %v1462 = vadd.f32 %v1264, %v1390
      %v1463 = vadd.f32 %v1265, %v1395
      %v1464 = vadd.f32 %v1266, %v1398
      %v1465 = vadd.f32 %v1267, %v1403
      %v1466 = vadd.f32 %v1268, %v1406
      %v1467 = vadd.f32 %v1269, %v1411
      %v1468 = vadd.f32 %v1270, %v1414
      %v1469 = vadd.f32 %v1271, %v1419
      %v1470 = vadd.f32 %v1272, %v1422
      %v1471 = vadd.f32 %v1273, %v1427
      %v1472 = vadd.f32 %v1274, %v1430
      %v1473 = vadd.f32 %v1275, %v1435
      %v1474 = vadd.f32 %v1276, %v1438
      %v1475 = vadd.f32 %v1277, %v1443
      %v1476 = vadd.f32 %v1278, %v1446
      %v1477 = vld [vmem:[%s223 + $0x8] sm:$0xc]
      %v1478 = vrot.slane %v1095, 1
      %v1479 = vsel %vm844, %v870, %v1478
      %v1480 = vrot.slane %v1282, 1
      %v1481 = vsel %vm844, %v1478, %v1480
      %v1483 = vunpack.c.l.b16 %v1477
      %v1484 = vpack.c.b16 %v1483, %v1483
      %v1485 = vrot.slane %v1484, 2
      %v1487 = vsel %vm475, %v1479, 0
      %v1490 = vsel %vm475, %v1481, 0
      %v1493 = vsel %vm518, %v1485, 0
      %1495 = vmatprep.subr.bf16.mxu0 0
      %1496 = vmatpush1.bf16.msra.mxu0 %v1493
      %1497 = vmatprep.subr.bf16.mxu0 0
      %1498 = vmatpush1.bf16.msra.mxu0 0
      %1499 = vmatprep.subr.bf16.mxu0 0
      %1500 = vmatpush1.bf16.msra.mxu0 0
      %1501 = vmatprep.subr.bf16.mxu0 0
      %1502 = vmatpush1.bf16.msra.mxu0 0
      %1503 = vmatprep.subr.bf16.mxu0 0
      %1504 = vmatpush1.bf16.msra.mxu0 0
      %1505 = vmatprep.subr.bf16.mxu0 0
      %1506 = vmatpush1.bf16.msra.mxu0 0
      %1507 = vmatprep.subr.bf16.mxu0 0
      %1508 = vmatpush1.bf16.msra.mxu0 0
      %1509 = vmatprep.subr.bf16.mxu0 0
      %1510 = vmatpush1.bf16.msra.mxu0 0
      %1511 = vmatprep.subr.bf16.mxu0 0
      %1512 = vmatpush1.bf16.msra.mxu0 0
      %1513 = vmatprep.subr.bf16.mxu0 0
      %1514 = vmatpush1.bf16.msra.mxu0 0
      %1515 = vmatprep.subr.bf16.mxu0 0
      %1516 = vmatpush1.bf16.msra.mxu0 0
      %1517 = vmatprep.subr.bf16.mxu0 0
      %1518 = vmatpush1.bf16.msra.mxu0 0
      %1519 = vmatprep.subr.bf16.mxu0 0
      %1520 = vmatpush1.bf16.msra.mxu0 0
      %1521 = vmatprep.subr.bf16.mxu0 0
      %1522 = vmatpush1.bf16.msra.mxu0 0
      %1523 = vmatprep.subr.bf16.mxu0 0
      %1524 = vmatpush1.bf16.msra.mxu0 0
      %1525 = vmatprep.subr.bf16.mxu0 0
      %1526 = vmatpush1.bf16.msra.mxu0 0
      %1527 = vmatprep.mubr.bf16.mxu0 0
      %1528 = vmatmul.mubr.bf16.gmra.mrb[0].mxu0 %v878
      %v1529 = vpop.f32.mrb[0].mxu0
      %v1530 = vadd.f32 0.0, %v1529
      %v1531 = vpop.f32.mrb[0].mxu0
      %v1532 = vpop.f32.mrb[0].mxu0
      %v1533 = vadd.f32 0.0, %v1532
      %v1534 = vpop.f32.mrb[0].mxu0
      %1535 = vmatprep.mubr.bf16.mxu0 0
      %1536 = vmatmul.mubr.bf16.gmra.mrb[0].mxu0 %v881
      %v1537 = vpop.f32.mrb[0].mxu0
      %v1538 = vadd.f32 0.0, %v1537
      %v1539 = vpop.f32.mrb[0].mxu0
      %v1540 = vpop.f32.mrb[0].mxu0
      %v1541 = vadd.f32 0.0, %v1540
      %v1542 = vpop.f32.mrb[0].mxu0
      %1543 = vmatprep.mubr.bf16.mxu0 0
      %1544 = vmatmul.mubr.bf16.gmra.mrb[0].mxu0 %v884
      %v1545 = vpop.f32.mrb[0].mxu0
      %v1546 = vadd.f32 0.0, %v1545
      %v1547 = vpop.f32.mrb[0].mxu0
      %v1548 = vpop.f32.mrb[0].mxu0
      %v1549 = vadd.f32 0.0, %v1548
      %v1550 = vpop.f32.mrb[0].mxu0
      %1551 = vmatprep.mubr.bf16.mxu0 0
      %1552 = vmatmul.mubr.bf16.gmra.mrb[0].mxu0 %v887
      %v1553 = vpop.f32.mrb[0].mxu0
      %v1554 = vadd.f32 0.0, %v1553
      %v1555 = vpop.f32.mrb[0].mxu0
      %v1556 = vpop.f32.mrb[0].mxu0
      %v1557 = vadd.f32 0.0, %v1556
      %v1558 = vpop.f32.mrb[0].mxu0
      %1559 = vmatprep.mubr.bf16.mxu0 0
      %1560 = vmatmul.mubr.bf16.gmra.mrb[0].mxu0 %v890
      %v1561 = vpop.f32.mrb[0].mxu0
      %v1562 = vadd.f32 0.0, %v1561
      %v1563 = vpop.f32.mrb[0].mxu0
      %v1564 = vpop.f32.mrb[0].mxu0
      %v1565 = vadd.f32 0.0, %v1564
      %v1566 = vpop.f32.mrb[0].mxu0
      %1567 = vmatprep.mubr.bf16.mxu0 0
      %1568 = vmatmul.mubr.bf16.gmra.mrb[0].mxu0 %v893
      %v1569 = vpop.f32.mrb[0].mxu0
      %v1570 = vadd.f32 0.0, %v1569
      %v1571 = vpop.f32.mrb[0].mxu0
      %v1572 = vpop.f32.mrb[0].mxu0
      %v1573 = vadd.f32 0.0, %v1572
      %v1574 = vpop.f32.mrb[0].mxu0
      %1575 = vmatprep.mubr.bf16.mxu0 0
      %1576 = vmatmul.mubr.bf16.gmra.mrb[0].mxu0 %v896
      %v1577 = vpop.f32.mrb[0].mxu0
      %v1578 = vadd.f32 0.0, %v1577
      %v1579 = vpop.f32.mrb[0].mxu0
      %v1580 = vpop.f32.mrb[0].mxu0
      %v1581 = vadd.f32 0.0, %v1580
      %v1582 = vpop.f32.mrb[0].mxu0
      %1583 = vmatprep.mubr.bf16.mxu0 0
      %1584 = vmatmul.mubr.bf16.gmra.mrb[0].mxu0 %v899
      %v1585 = vpop.f32.mrb[0].mxu0
      %v1586 = vadd.f32 0.0, %v1585
      %v1587 = vpop.f32.mrb[0].mxu0
      %v1588 = vpop.f32.mrb[0].mxu0
      %v1589 = vadd.f32 0.0, %v1588
      %v1590 = vpop.f32.mrb[0].mxu0
      %1591 = vmatprep.mubr.bf16.mxu0 0
      %1592 = vmatmul.mubr.bf16.gmra.mrb[0].mxu0 %v902
      %v1593 = vpop.f32.mrb[0].mxu0
      %v1594 = vadd.f32 0.0, %v1593
      %v1595 = vpop.f32.mrb[0].mxu0
      %v1596 = vpop.f32.mrb[0].mxu0
      %v1597 = vadd.f32 0.0, %v1596
      %v1598 = vpop.f32.mrb[0].mxu0
      %1599 = vmatprep.mubr.bf16.mxu0 0
      %1600 = vmatmul.mubr.bf16.gmra.mrb[0].mxu0 %v905
      %v1601 = vpop.f32.mrb[0].mxu0
      %v1602 = vadd.f32 0.0, %v1601
      %v1603 = vpop.f32.mrb[0].mxu0
      %v1604 = vpop.f32.mrb[0].mxu0
      %v1605 = vadd.f32 0.0, %v1604
      %v1606 = vpop.f32.mrb[0].mxu0
      %1607 = vmatprep.mubr.bf16.mxu0 0
      %1608 = vmatmul.mubr.bf16.gmra.mrb[0].mxu0 %v908
      %v1609 = vpop.f32.mrb[0].mxu0
      %v1610 = vadd.f32 0.0, %v1609
      %v1611 = vpop.f32.mrb[0].mxu0
      %v1612 = vpop.f32.mrb[0].mxu0
      %v1613 = vadd.f32 0.0, %v1612
      %v1614 = vpop.f32.mrb[0].mxu0
      %1615 = vmatprep.mubr.bf16.mxu0 0
      %1616 = vmatmul.mubr.bf16.gmra.mrb[0].mxu0 %v911
      %v1617 = vpop.f32.mrb[0].mxu0
      %v1618 = vadd.f32 0.0, %v1617
      %v1619 = vpop.f32.mrb[0].mxu0
      %v1620 = vpop.f32.mrb[0].mxu0
      %v1621 = vadd.f32 0.0, %v1620
      %v1622 = vpop.f32.mrb[0].mxu0
      %1623 = vmatprep.mubr.bf16.mxu0 0
      %1624 = vmatmul.mubr.bf16.gmra.mrb[0].mxu0 %v1487
      %v1625 = vpop.f32.mrb[0].mxu0
      %v1626 = vadd.f32 0.0, %v1625
      %v1627 = vpop.f32.mrb[0].mxu0
      %v1628 = vpop.f32.mrb[0].mxu0
      %v1629 = vadd.f32 0.0, %v1628
      %v1630 = vpop.f32.mrb[0].mxu0
      %1631 = vmatprep.mubr.bf16.mxu0 0
      %1632 = vmatmul.mubr.bf16.gmra.mrb[0].mxu0 %v1490
      %v1633 = vpop.f32.mrb[0].mxu0
      %v1634 = vadd.f32 0.0, %v1633
      %v1635 = vpop.f32.mrb[0].mxu0
      %v1636 = vpop.f32.mrb[0].mxu0
      %v1637 = vadd.f32 0.0, %v1636
      %v1638 = vpop.f32.mrb[0].mxu0
      %1639 = vdwg.mxu0
      %v1640 = vadd.f32 %v1449, %v1530
      %v1641 = vadd.f32 %v1450, %v1533
      %v1642 = vadd.f32 %v1451, %v1538
      %v1643 = vadd.f32 %v1452, %v1541
      %v1644 = vadd.f32 %v1453, %v1546
      %v1645 = vadd.f32 %v1454, %v1549
      %v1646 = vadd.f32 %v1455, %v1554
      %v1647 = vadd.f32 %v1456, %v1557
      %v1648 = vadd.f32 %v1457, %v1562
      %v1649 = vadd.f32 %v1458, %v1565
      %v1650 = vadd.f32 %v1459, %v1570
      %v1651 = vadd.f32 %v1460, %v1573
      %v1652 = vadd.f32 %v1461, %v1578
      %v1653 = vadd.f32 %v1462, %v1581
      %v1654 = vadd.f32 %v1463, %v1586
      %v1655 = vadd.f32 %v1464, %v1589
      %v1656 = vadd.f32 %v1465, %v1594
      %v1657 = vadd.f32 %v1466, %v1597
      %v1658 = vadd.f32 %v1467, %v1602
      %v1659 = vadd.f32 %v1468, %v1605
      %v1660 = vadd.f32 %v1469, %v1610
      %v1661 = vadd.f32 %v1470, %v1613
      %v1662 = vadd.f32 %v1471, %v1618
      %v1663 = vadd.f32 %v1472, %v1621
      %v1664 = vadd.f32 %v1473, %v1626
      %v1665 = vadd.f32 %v1474, %v1629
      %v1666 = vadd.f32 %v1475, %v1634
      %v1667 = vadd.f32 %v1476, %v1637
      %v1668 = vld [vmem:[%s223 + $0xc] sm:$0x3]
      %v1670 = vunpack.c.l.b16 %v277
      %v1671 = vpack.c.b16 %v1670, %v1281
      %v1673 = vsel %vm475, %v1671, 0
      %v1676 = vsel %vm518, %v1668, 0
      %1678 = vmatprep.subr.bf16.mxu0 0
      %1679 = vmatpush1.bf16.msra.mxu0 %v1676
      %1680 = vmatprep.subr.bf16.mxu0 0
      %1681 = vmatpush1.bf16.msra.mxu0 0
      %1682 = vmatprep.subr.bf16.mxu0 0
      %1683 = vmatpush1.bf16.msra.mxu0 0
      %1684 = vmatprep.subr.bf16.mxu0 0
      %1685 = vmatpush1.bf16.msra.mxu0 0
      %1686 = vmatprep.subr.bf16.mxu0 0
      %1687 = vmatpush1.bf16.msra.mxu0 0
      %1688 = vmatprep.subr.bf16.mxu0 0
      %1689 = vmatpush1.bf16.msra.mxu0 0
      %1690 = vmatprep.subr.bf16.mxu0 0
      %1691 = vmatpush1.bf16.msra.mxu0 0
      %1692 = vmatprep.subr.bf16.mxu0 0
      %1693 = vmatpush1.bf16.msra.mxu0 0
      %1694 = vmatprep.subr.bf16.mxu0 0
      %1695 = vmatpush1.bf16.msra.mxu0 0
      %1696 = vmatprep.subr.bf16.mxu0 0
      %1697 = vmatpush1.bf16.msra.mxu0 0
      %1698 = vmatprep.subr.bf16.mxu0 0
      %1699 = vmatpush1.bf16.msra.mxu0 0
      %1700 = vmatprep.subr.bf16.mxu0 0
      %1701 = vmatpush1.bf16.msra.mxu0 0
      %1702 = vmatprep.subr.bf16.mxu0 0
      %1703 = vmatpush1.bf16.msra.mxu0 0
      %1704 = vmatprep.subr.bf16.mxu0 0
      %1705 = vmatpush1.bf16.msra.mxu0 0
      %1706 = vmatprep.subr.bf16.mxu0 0
      %1707 = vmatpush1.bf16.msra.mxu0 0
      %1708 = vmatprep.subr.bf16.mxu0 0
      %1709 = vmatpush1.bf16.msra.mxu0 0
      %1710 = vmatprep.mubr.bf16.mxu0 0
      %1711 = vmatmul.mubr.bf16.gmra.mrb[0].mxu0 %v671
      %v1712 = vpop.f32.mrb[0].mxu0
      %v1713 = vadd.f32 0.0, %v1712
      %v1714 = vpop.f32.mrb[0].mxu0
      %v1715 = vpop.f32.mrb[0].mxu0
      %v1716 = vadd.f32 0.0, %v1715
      %v1717 = vpop.f32.mrb[0].mxu0
      %1718 = vmatprep.mubr.bf16.mxu0 0
      %1719 = vmatmul.mubr.bf16.gmra.mrb[0].mxu0 %v673
      %v1720 = vpop.f32.mrb[0].mxu0
      %v1721 = vadd.f32 0.0, %v1720
      %v1722 = vpop.f32.mrb[0].mxu0
      %v1723 = vpop.f32.mrb[0].mxu0
      %v1724 = vadd.f32 0.0, %v1723
      %v1725 = vpop.f32.mrb[0].mxu0
      %1726 = vmatprep.mubr.bf16.mxu0 0
      %1727 = vmatmul.mubr.bf16.gmra.mrb[0].mxu0 %v675
      %v1728 = vpop.f32.mrb[0].mxu0
      %v1729 = vadd.f32 0.0, %v1728
      %v1730 = vpop.f32.mrb[0].mxu0
      %v1731 = vpop.f32.mrb[0].mxu0
      %v1732 = vadd.f32 0.0, %v1731
      %v1733 = vpop.f32.mrb[0].mxu0
      %1734 = vmatprep.mubr.bf16.mxu0 0
      %1735 = vmatmul.mubr.bf16.gmra.mrb[0].mxu0 %v677
      %v1736 = vpop.f32.mrb[0].mxu0
      %v1737 = vadd.f32 0.0, %v1736
      %v1738 = vpop.f32.mrb[0].mxu0
      %v1739 = vpop.f32.mrb[0].mxu0
      %v1740 = vadd.f32 0.0, %v1739
      %v1741 = vpop.f32.mrb[0].mxu0
      %1742 = vmatprep.mubr.bf16.mxu0 0
      %1743 = vmatmul.mubr.bf16.gmra.mrb[0].mxu0 %v679
      %v1744 = vpop.f32.mrb[0].mxu0
      %v1745 = vadd.f32 0.0, %v1744
      %v1746 = vpop.f32.mrb[0].mxu0
      %v1747 = vpop.f32.mrb[0].mxu0
      %v1748 = vadd.f32 0.0, %v1747
      %v1749 = vpop.f32.mrb[0].mxu0
      %1750 = vmatprep.mubr.bf16.mxu0 0
      %1751 = vmatmul.mubr.bf16.gmra.mrb[0].mxu0 %v681
      %v1752 = vpop.f32.mrb[0].mxu0
      %v1753 = vadd.f32 0.0, %v1752
      %v1754 = vpop.f32.mrb[0].mxu0
      %v1755 = vpop.f32.mrb[0].mxu0
      %v1756 = vadd.f32 0.0, %v1755
      %v1757 = vpop.f32.mrb[0].mxu0
      %1758 = vmatprep.mubr.bf16.mxu0 0
      %1759 = vmatmul.mubr.bf16.gmra.mrb[0].mxu0 %v683
      %v1760 = vpop.f32.mrb[0].mxu0
      %v1761 = vadd.f32 0.0, %v1760
      %v1762 = vpop.f32.mrb[0].mxu0
      %v1763 = vpop.f32.mrb[0].mxu0
      %v1764 = vadd.f32 0.0, %v1763
      %v1765 = vpop.f32.mrb[0].mxu0
      %1766 = vmatprep.mubr.bf16.mxu0 0
      %1767 = vmatmul.mubr.bf16.gmra.mrb[0].mxu0 %v685
      %v1768 = vpop.f32.mrb[0].mxu0
      %v1769 = vadd.f32 0.0, %v1768
      %v1770 = vpop.f32.mrb[0].mxu0
      %v1771 = vpop.f32.mrb[0].mxu0
      %v1772 = vadd.f32 0.0, %v1771
      %v1773 = vpop.f32.mrb[0].mxu0
      %1774 = vmatprep.mubr.bf16.mxu0 0
      %1775 = vmatmul.mubr.bf16.gmra.mrb[0].mxu0 %v687
      %v1776 = vpop.f32.mrb[0].mxu0
      %v1777 = vadd.f32 0.0, %v1776
      %v1778 = vpop.f32.mrb[0].mxu0
      %v1779 = vpop.f32.mrb[0].mxu0
      %v1780 = vadd.f32 0.0, %v1779
      %v1781 = vpop.f32.mrb[0].mxu0
      %1782 = vmatprep.mubr.bf16.mxu0 0
      %1783 = vmatmul.mubr.bf16.gmra.mrb[0].mxu0 %v689
      %v1784 = vpop.f32.mrb[0].mxu0
      %v1785 = vadd.f32 0.0, %v1784
      %v1786 = vpop.f32.mrb[0].mxu0
      %v1787 = vpop.f32.mrb[0].mxu0
      %v1788 = vadd.f32 0.0, %v1787
      %v1789 = vpop.f32.mrb[0].mxu0
      %1790 = vmatprep.mubr.bf16.mxu0 0
      %1791 = vmatmul.mubr.bf16.gmra.mrb[0].mxu0 %v691
      %v1792 = vpop.f32.mrb[0].mxu0
      %v1793 = vadd.f32 0.0, %v1792
      %v1794 = vpop.f32.mrb[0].mxu0
      %v1795 = vpop.f32.mrb[0].mxu0
      %v1796 = vadd.f32 0.0, %v1795
      %v1797 = vpop.f32.mrb[0].mxu0
      %1798 = vmatprep.mubr.bf16.mxu0 0
      %1799 = vmatmul.mubr.bf16.gmra.mrb[0].mxu0 %v693
      %v1800 = vpop.f32.mrb[0].mxu0
      %v1801 = vadd.f32 0.0, %v1800
      %v1802 = vpop.f32.mrb[0].mxu0
      %v1803 = vpop.f32.mrb[0].mxu0
      %v1804 = vadd.f32 0.0, %v1803
      %v1805 = vpop.f32.mrb[0].mxu0
      %1806 = vmatprep.mubr.bf16.mxu0 0
      %1807 = vmatmul.mubr.bf16.gmra.mrb[0].mxu0 %v1101
      %v1808 = vpop.f32.mrb[0].mxu0
      %v1809 = vadd.f32 0.0, %v1808
      %v1810 = vpop.f32.mrb[0].mxu0
      %v1811 = vpop.f32.mrb[0].mxu0
      %v1812 = vadd.f32 0.0, %v1811
      %v1813 = vpop.f32.mrb[0].mxu0
      %1814 = vmatprep.mubr.bf16.mxu0 0
      %1815 = vmatmul.mubr.bf16.gmra.mrb[0].mxu0 %v1673
      %v1816 = vpop.f32.mrb[0].mxu0
      %v1817 = vadd.f32 0.0, %v1816
      %v1818 = vpop.f32.mrb[0].mxu0
      %v1819 = vpop.f32.mrb[0].mxu0
      %v1820 = vadd.f32 0.0, %v1819
      %v1821 = vpop.f32.mrb[0].mxu0
      %1822 = vdwg.mxu0
      %v1823 = vadd.f32 %v1640, %v1713
      %v1824 = vadd.f32 %v1641, %v1716
      %v1825 = vadd.f32 %v1642, %v1721
      %v1826 = vadd.f32 %v1643, %v1724
      %v1827 = vadd.f32 %v1644, %v1729
      %v1828 = vadd.f32 %v1645, %v1732
      %v1829 = vadd.f32 %v1646, %v1737
      %v1830 = vadd.f32 %v1647, %v1740
      %v1831 = vadd.f32 %v1648, %v1745
      %v1832 = vadd.f32 %v1649, %v1748
      %v1833 = vadd.f32 %v1650, %v1753
      %v1834 = vadd.f32 %v1651, %v1756
      %v1835 = vadd.f32 %v1652, %v1761
      %v1836 = vadd.f32 %v1653, %v1764
      %v1837 = vadd.f32 %v1654, %v1769
      %v1838 = vadd.f32 %v1655, %v1772
      %v1839 = vadd.f32 %v1656, %v1777
      %v1840 = vadd.f32 %v1657, %v1780
      %v1841 = vadd.f32 %v1658, %v1785
      %v1842 = vadd.f32 %v1659, %v1788
      %v1843 = vadd.f32 %v1660, %v1793
      %v1844 = vadd.f32 %v1661, %v1796
      %v1845 = vadd.f32 %v1662, %v1801
      %v1846 = vadd.f32 %v1663, %v1804
      %v1847 = vadd.f32 %v1664, %v1809
      %v1848 = vadd.f32 %v1665, %v1812
      %v1849 = vadd.f32 %v1666, %v1817
      %v1850 = vadd.f32 %v1667, %v1820
      %v1851 = vld [vmem:[%s223 + $0xc] sm:$0xc]
      %v1853 = vunpack.c.l.b16 %v278
      %v1854 = vpack.c.b16 %v1853, %v1853
      %v1855 = vshll.u32 %v1671, 16
      %v1857 = vrot.slane %v1855, 1
      %v1858 = vsel %vm354, %v1289, %v1857
      %v1859 = vshrl.u32 %v1671, 16
      %v1861 = vor.u32 %v1859, %v1857
      %v1863 = vshll.u32 %v1854, 16
      %v1865 = vrot.slane %v1863, 1
      %v1866 = vsel %vm354, %v1861, %v1865
      %v1868 = vunpack.c.l.b16 %v1851
      %v1869 = vpack.c.b16 %v1868, %v1868
      %v1870 = vrot.slane %v1869, 2
      %v1872 = vsel %vm475, %v1858, 0
      %v1875 = vsel %vm475, %v1866, 0
      %v1878 = vsel %vm518, %v1870, 0
      %1880 = vmatprep.subr.bf16.mxu0 0
      %1881 = vmatpush1.bf16.msra.mxu0 %v1878
      %1882 = vmatprep.subr.bf16.mxu0 0
      %1883 = vmatpush1.bf16.msra.mxu0 0
      %1884 = vmatprep.subr.bf16.mxu0 0
      %1885 = vmatpush1.bf16.msra.mxu0 0
      %1886 = vmatprep.subr.bf16.mxu0 0
      %1887 = vmatpush1.bf16.msra.mxu0 0
      %1888 = vmatprep.subr.bf16.mxu0 0
      %1889 = vmatpush1.bf16.msra.mxu0 0
      %1890 = vmatprep.subr.bf16.mxu0 0
      %1891 = vmatpush1.bf16.msra.mxu0 0
      %1892 = vmatprep.subr.bf16.mxu0 0
      %1893 = vmatpush1.bf16.msra.mxu0 0
      %1894 = vmatprep.subr.bf16.mxu0 0
      %1895 = vmatpush1.bf16.msra.mxu0 0
      %1896 = vmatprep.subr.bf16.mxu0 0
      %1897 = vmatpush1.bf16.msra.mxu0 0
      %1898 = vmatprep.subr.bf16.mxu0 0
      %1899 = vmatpush1.bf16.msra.mxu0 0
      %1900 = vmatprep.subr.bf16.mxu0 0
      %1901 = vmatpush1.bf16.msra.mxu0 0
      %1902 = vmatprep.subr.bf16.mxu0 0
      %1903 = vmatpush1.bf16.msra.mxu0 0
      %1904 = vmatprep.subr.bf16.mxu0 0
      %1905 = vmatpush1.bf16.msra.mxu0 0
      %1906 = vmatprep.subr.bf16.mxu0 0
      %1907 = vmatpush1.bf16.msra.mxu0 0
      %1908 = vmatprep.subr.bf16.mxu0 0
      %1909 = vmatpush1.bf16.msra.mxu0 0
      %1910 = vmatprep.subr.bf16.mxu0 0
      %1911 = vmatpush1.bf16.msra.mxu0 0
      %1912 = vmatprep.mubr.bf16.mxu0 0
      %1913 = vmatmul.mubr.bf16.gmra.mrb[0].mxu0 %v483
      %v1914 = vpop.f32.mrb[0].mxu0
      %v1915 = vadd.f32 0.0, %v1914
      %v1916 = vpop.f32.mrb[0].mxu0
      %v1917 = vpop.f32.mrb[0].mxu0
      %v1918 = vadd.f32 0.0, %v1917
      %v1919 = vpop.f32.mrb[0].mxu0
      %1920 = vmatprep.mubr.bf16.mxu0 0
      %1921 = vmatmul.mubr.bf16.gmra.mrb[0].mxu0 %v486
      %v1922 = vpop.f32.mrb[0].mxu0
      %v1923 = vadd.f32 0.0, %v1922
      %v1924 = vpop.f32.mrb[0].mxu0
      %v1925 = vpop.f32.mrb[0].mxu0
      %v1926 = vadd.f32 0.0, %v1925
      %v1927 = vpop.f32.mrb[0].mxu0
      %1928 = vmatprep.mubr.bf16.mxu0 0
      %1929 = vmatmul.mubr.bf16.gmra.mrb[0].mxu0 %v489
      %v1930 = vpop.f32.mrb[0].mxu0
      %v1931 = vadd.f32 0.0, %v1930
      %v1932 = vpop.f32.mrb[0].mxu0
      %v1933 = vpop.f32.mrb[0].mxu0
      %v1934 = vadd.f32 0.0, %v1933
      %v1935 = vpop.f32.mrb[0].mxu0
      %1936 = vmatprep.mubr.bf16.mxu0 0
      %1937 = vmatmul.mubr.bf16.gmra.mrb[0].mxu0 %v492
      %v1938 = vpop.f32.mrb[0].mxu0
      %v1939 = vadd.f32 0.0, %v1938
      %v1940 = vpop.f32.mrb[0].mxu0
      %v1941 = vpop.f32.mrb[0].mxu0
      %v1942 = vadd.f32 0.0, %v1941
      %v1943 = vpop.f32.mrb[0].mxu0
      %1944 = vmatprep.mubr.bf16.mxu0 0
      %1945 = vmatmul.mubr.bf16.gmra.mrb[0].mxu0 %v495
      %v1946 = vpop.f32.mrb[0].mxu0
      %v1947 = vadd.f32 0.0, %v1946
      %v1948 = vpop.f32.mrb[0].mxu0
      %v1949 = vpop.f32.mrb[0].mxu0
      %v1950 = vadd.f32 0.0, %v1949
      %v1951 = vpop.f32.mrb[0].mxu0
      %1952 = vmatprep.mubr.bf16.mxu0 0
      %1953 = vmatmul.mubr.bf16.gmra.mrb[0].mxu0 %v498
      %v1954 = vpop.f32.mrb[0].mxu0
      %v1955 = vadd.f32 0.0, %v1954
      %v1956 = vpop.f32.mrb[0].mxu0
      %v1957 = vpop.f32.mrb[0].mxu0
      %v1958 = vadd.f32 0.0, %v1957
      %v1959 = vpop.f32.mrb[0].mxu0
      %1960 = vmatprep.mubr.bf16.mxu0 0
      %1961 = vmatmul.mubr.bf16.gmra.mrb[0].mxu0 %v501
      %v1962 = vpop.f32.mrb[0].mxu0
      %v1963 = vadd.f32 0.0, %v1962
      %v1964 = vpop.f32.mrb[0].mxu0
      %v1965 = vpop.f32.mrb[0].mxu0
      %v1966 = vadd.f32 0.0, %v1965
      %v1967 = vpop.f32.mrb[0].mxu0
      %1968 = vmatprep.mubr.bf16.mxu0 0
      %1969 = vmatmul.mubr.bf16.gmra.mrb[0].mxu0 %v504
      %v1970 = vpop.f32.mrb[0].mxu0
      %v1971 = vadd.f32 0.0, %v1970
      %v1972 = vpop.f32.mrb[0].mxu0
      %v1973 = vpop.f32.mrb[0].mxu0
      %v1974 = vadd.f32 0.0, %v1973
      %v1975 = vpop.f32.mrb[0].mxu0
      %1976 = vmatprep.mubr.bf16.mxu0 0
      %1977 = vmatmul.mubr.bf16.gmra.mrb[0].mxu0 %v507
      %v1978 = vpop.f32.mrb[0].mxu0
      %v1979 = vadd.f32 0.0, %v1978
      %v1980 = vpop.f32.mrb[0].mxu0
      %v1981 = vpop.f32.mrb[0].mxu0
      %v1982 = vadd.f32 0.0, %v1981
      %v1983 = vpop.f32.mrb[0].mxu0
      %1984 = vmatprep.mubr.bf16.mxu0 0
      %1985 = vmatmul.mubr.bf16.gmra.mrb[0].mxu0 %v510
      %v1986 = vpop.f32.mrb[0].mxu0
      %v1987 = vadd.f32 0.0, %v1986
      %v1988 = vpop.f32.mrb[0].mxu0
      %v1989 = vpop.f32.mrb[0].mxu0
      %v1990 = vadd.f32 0.0, %v1989
      %v1991 = vpop.f32.mrb[0].mxu0
      %1992 = vmatprep.mubr.bf16.mxu0 0
      %1993 = vmatmul.mubr.bf16.gmra.mrb[0].mxu0 %v513
      %v1994 = vpop.f32.mrb[0].mxu0
      %v1995 = vadd.f32 0.0, %v1994
      %v1996 = vpop.f32.mrb[0].mxu0
      %v1997 = vpop.f32.mrb[0].mxu0
      %v1998 = vadd.f32 0.0, %v1997
      %v1999 = vpop.f32.mrb[0].mxu0
      %2000 = vmatprep.mubr.bf16.mxu0 0
      %2001 = vmatmul.mubr.bf16.gmra.mrb[0].mxu0 %v1296
      %v2002 = vpop.f32.mrb[0].mxu0
      %v2003 = vadd.f32 0.0, %v2002
      %v2004 = vpop.f32.mrb[0].mxu0
      %v2005 = vpop.f32.mrb[0].mxu0
      %v2006 = vadd.f32 0.0, %v2005
      %v2007 = vpop.f32.mrb[0].mxu0
      %2008 = vmatprep.mubr.bf16.mxu0 0
      %2009 = vmatmul.mubr.bf16.gmra.mrb[0].mxu0 %v1872
      %v2010 = vpop.f32.mrb[0].mxu0
      %v2011 = vadd.f32 0.0, %v2010
      %v2012 = vpop.f32.mrb[0].mxu0
      %v2013 = vpop.f32.mrb[0].mxu0
      %v2014 = vadd.f32 0.0, %v2013
      %v2015 = vpop.f32.mrb[0].mxu0
      %2016 = vmatprep.mubr.bf16.mxu0 0
      %2017 = vmatmul.mubr.bf16.gmra.mrb[0].mxu0 %v1875
      %v2018 = vpop.f32.mrb[0].mxu0
      %v2019 = vadd.f32 0.0, %v2018
      %v2020 = vpop.f32.mrb[0].mxu0
      %v2021 = vpop.f32.mrb[0].mxu0
      %v2022 = vadd.f32 0.0, %v2021
      %v2023 = vpop.f32.mrb[0].mxu0
      %2024 = vdwg.mxu0
      %v2025 = vadd.f32 %v1823, %v1915
      %v2026 = vadd.f32 %v1824, %v1918
      %v2027 = vadd.f32 %v1825, %v1923
      %v2028 = vadd.f32 %v1826, %v1926
      %v2029 = vadd.f32 %v1827, %v1931
      %v2030 = vadd.f32 %v1828, %v1934
      %v2031 = vadd.f32 %v1829, %v1939
      %v2032 = vadd.f32 %v1830, %v1942
      %v2033 = vadd.f32 %v1831, %v1947
      %v2034 = vadd.f32 %v1832, %v1950
      %v2035 = vadd.f32 %v1833, %v1955
      %v2036 = vadd.f32 %v1834, %v1958
      %v2037 = vadd.f32 %v1835, %v1963
      %v2038 = vadd.f32 %v1836, %v1966
      %v2039 = vadd.f32 %v1837, %v1971
      %v2040 = vadd.f32 %v1838, %v1974
      %v2041 = vadd.f32 %v1839, %v1979
      %v2042 = vadd.f32 %v1840, %v1982
      %v2043 = vadd.f32 %v1841, %v1987
      %v2044 = vadd.f32 %v1842, %v1990
      %v2045 = vadd.f32 %v1843, %v1995
      %v2046 = vadd.f32 %v1844, %v1998
      %v2047 = vadd.f32 %v1845, %v2003
      %v2048 = vadd.f32 %v1846, %v2006
      %v2049 = vadd.f32 %v1847, %v2011
      %v2050 = vadd.f32 %v1848, %v2014
      %v2051 = vadd.f32 %v1849, %v2019
      %v2052 = vadd.f32 %v1850, %v2022
      %v2053 = vld [vmem:[%s223 + $0x10] sm:$0x3]
      %v2054 = vrot.slane %v1671, 1
      %v2055 = vsel %vm844, %v1478, %v2054
      %v2056 = vrot.slane %v1854, 1
      %v2057 = vsel %vm844, %v2054, %v2056
      %v2059 = vsel %vm475, %v2055, 0
      %v2062 = vsel %vm475, %v2057, 0
      %v2065 = vsel %vm518, %v2053, 0
      %2067 = vmatprep.subr.bf16.mxu0 0
      %2068 = vmatpush1.bf16.msra.mxu0 %v2065
      %2069 = vmatprep.subr.bf16.mxu0 0
      %2070 = vmatpush1.bf16.msra.mxu0 0
      %2071 = vmatprep.subr.bf16.mxu0 0
      %2072 = vmatpush1.bf16.msra.mxu0 0
      %2073 = vmatprep.subr.bf16.mxu0 0
      %2074 = vmatpush1.bf16.msra.mxu0 0
      %2075 = vmatprep.subr.bf16.mxu0 0
      %2076 = vmatpush1.bf16.msra.mxu0 0
      %2077 = vmatprep.subr.bf16.mxu0 0
      %2078 = vmatpush1.bf16.msra.mxu0 0
      %2079 = vmatprep.subr.bf16.mxu0 0
      %2080 = vmatpush1.bf16.msra.mxu0 0
      %2081 = vmatprep.subr.bf16.mxu0 0
      %2082 = vmatpush1.bf16.msra.mxu0 0
      %2083 = vmatprep.subr.bf16.mxu0 0
      %2084 = vmatpush1.bf16.msra.mxu0 0
      %2085 = vmatprep.subr.bf16.mxu0 0
      %2086 = vmatpush1.bf16.msra.mxu0 0
      %2087 = vmatprep.subr.bf16.mxu0 0
      %2088 = vmatpush1.bf16.msra.mxu0 0
      %2089 = vmatprep.subr.bf16.mxu0 0
      %2090 = vmatpush1.bf16.msra.mxu0 0
      %2091 = vmatprep.subr.bf16.mxu0 0
      %2092 = vmatpush1.bf16.msra.mxu0 0
      %2093 = vmatprep.subr.bf16.mxu0 0
      %2094 = vmatpush1.bf16.msra.mxu0 0
      %2095 = vmatprep.subr.bf16.mxu0 0
      %2096 = vmatpush1.bf16.msra.mxu0 0
      %2097 = vmatprep.subr.bf16.mxu0 0
      %2098 = vmatpush1.bf16.msra.mxu0 0
      %2099 = vmatprep.mubr.bf16.mxu0 0
      %2100 = vmatmul.mubr.bf16.gmra.mrb[0].mxu0 %v881
      %v2101 = vpop.f32.mrb[0].mxu0
      %v2102 = vadd.f32 0.0, %v2101
      %v2103 = vpop.f32.mrb[0].mxu0
      %v2104 = vpop.f32.mrb[0].mxu0
      %v2105 = vadd.f32 0.0, %v2104
      %v2106 = vpop.f32.mrb[0].mxu0
      %2107 = vmatprep.mubr.bf16.mxu0 0
      %2108 = vmatmul.mubr.bf16.gmra.mrb[0].mxu0 %v884
      %v2109 = vpop.f32.mrb[0].mxu0
      %v2110 = vadd.f32 0.0, %v2109
      %v2111 = vpop.f32.mrb[0].mxu0
      %v2112 = vpop.f32.mrb[0].mxu0
      %v2113 = vadd.f32 0.0, %v2112
      %v2114 = vpop.f32.mrb[0].mxu0
      %2115 = vmatprep.mubr.bf16.mxu0 0
      %2116 = vmatmul.mubr.bf16.gmra.mrb[0].mxu0 %v887
      %v2117 = vpop.f32.mrb[0].mxu0
      %v2118 = vadd.f32 0.0, %v2117
      %v2119 = vpop.f32.mrb[0].mxu0
      %v2120 = vpop.f32.mrb[0].mxu0
      %v2121 = vadd.f32 0.0, %v2120
      %v2122 = vpop.f32.mrb[0].mxu0
      %2123 = vmatprep.mubr.bf16.mxu0 0
      %2124 = vmatmul.mubr.bf16.gmra.mrb[0].mxu0 %v890
      %v2125 = vpop.f32.mrb[0].mxu0
      %v2126 = vadd.f32 0.0, %v2125
      %v2127 = vpop.f32.mrb[0].mxu0
      %v2128 = vpop.f32.mrb[0].mxu0
      %v2129 = vadd.f32 0.0, %v2128
      %v2130 = vpop.f32.mrb[0].mxu0
      %2131 = vmatprep.mubr.bf16.mxu0 0
      %2132 = vmatmul.mubr.bf16.gmra.mrb[0].mxu0 %v893
      %v2133 = vpop.f32.mrb[0].mxu0
      %v2134 = vadd.f32 0.0, %v2133
      %v2135 = vpop.f32.mrb[0].mxu0
      %v2136 = vpop.f32.mrb[0].mxu0
      %v2137 = vadd.f32 0.0, %v2136
      %v2138 = vpop.f32.mrb[0].mxu0
      %2139 = vmatprep.mubr.bf16.mxu0 0
      %2140 = vmatmul.mubr.bf16.gmra.mrb[0].mxu0 %v896
      %v2141 = vpop.f32.mrb[0].mxu0
      %v2142 = vadd.f32 0.0, %v2141
      %v2143 = vpop.f32.mrb[0].mxu0
      %v2144 = vpop.f32.mrb[0].mxu0
      %v2145 = vadd.f32 0.0, %v2144
      %v2146 = vpop.f32.mrb[0].mxu0
      %2147 = vmatprep.mubr.bf16.mxu0 0
      %2148 = vmatmul.mubr.bf16.gmra.mrb[0].mxu0 %v899
      %v2149 = vpop.f32.mrb[0].mxu0
      %v2150 = vadd.f32 0.0, %v2149
      %v2151 = vpop.f32.mrb[0].mxu0
      %v2152 = vpop.f32.mrb[0].mxu0
      %v2153 = vadd.f32 0.0, %v2152
      %v2154 = vpop.f32.mrb[0].mxu0
      %2155 = vmatprep.mubr.bf16.mxu0 0
      %2156 = vmatmul.mubr.bf16.gmra.mrb[0].mxu0 %v902
      %v2157 = vpop.f32.mrb[0].mxu0
      %v2158 = vadd.f32 0.0, %v2157
      %v2159 = vpop.f32.mrb[0].mxu0
      %v2160 = vpop.f32.mrb[0].mxu0
      %v2161 = vadd.f32 0.0, %v2160
      %v2162 = vpop.f32.mrb[0].mxu0
      %2163 = vmatprep.mubr.bf16.mxu0 0
      %2164 = vmatmul.mubr.bf16.gmra.mrb[0].mxu0 %v905
      %v2165 = vpop.f32.mrb[0].mxu0
      %v2166 = vadd.f32 0.0, %v2165
      %v2167 = vpop.f32.mrb[0].mxu0
      %v2168 = vpop.f32.mrb[0].mxu0
      %v2169 = vadd.f32 0.0, %v2168
      %v2170 = vpop.f32.mrb[0].mxu0
      %2171 = vmatprep.mubr.bf16.mxu0 0
      %2172 = vmatmul.mubr.bf16.gmra.mrb[0].mxu0 %v908
      %v2173 = vpop.f32.mrb[0].mxu0
      %v2174 = vadd.f32 0.0, %v2173
      %v2175 = vpop.f32.mrb[0].mxu0
      %v2176 = vpop.f32.mrb[0].mxu0
      %v2177 = vadd.f32 0.0, %v2176
      %v2178 = vpop.f32.mrb[0].mxu0
      %2179 = vmatprep.mubr.bf16.mxu0 0
      %2180 = vmatmul.mubr.bf16.gmra.mrb[0].mxu0 %v911
      %v2181 = vpop.f32.mrb[0].mxu0
      %v2182 = vadd.f32 0.0, %v2181
      %v2183 = vpop.f32.mrb[0].mxu0
      %v2184 = vpop.f32.mrb[0].mxu0
      %v2185 = vadd.f32 0.0, %v2184
      %v2186 = vpop.f32.mrb[0].mxu0
      %2187 = vmatprep.mubr.bf16.mxu0 0
      %2188 = vmatmul.mubr.bf16.gmra.mrb[0].mxu0 %v1487
      %v2189 = vpop.f32.mrb[0].mxu0
      %v2190 = vadd.f32 0.0, %v2189
      %v2191 = vpop.f32.mrb[0].mxu0
      %v2192 = vpop.f32.mrb[0].mxu0
      %v2193 = vadd.f32 0.0, %v2192
      %v2194 = vpop.f32.mrb[0].mxu0
      %2195 = vmatprep.mubr.bf16.mxu0 0
      %2196 = vmatmul.mubr.bf16.gmra.mrb[0].mxu0 %v2059
      %v2197 = vpop.f32.mrb[0].mxu0
      %v2198 = vadd.f32 0.0, %v2197
      %v2199 = vpop.f32.mrb[0].mxu0
      %v2200 = vpop.f32.mrb[0].mxu0
      %v2201 = vadd.f32 0.0, %v2200
      %v2202 = vpop.f32.mrb[0].mxu0
      %2203 = vmatprep.mubr.bf16.mxu0 0
      %2204 = vmatmul.mubr.bf16.gmra.mrb[0].mxu0 %v2062
      %v2205 = vpop.f32.mrb[0].mxu0
      %v2206 = vadd.f32 0.0, %v2205
      %v2207 = vpop.f32.mrb[0].mxu0
      %v2208 = vpop.f32.mrb[0].mxu0
      %v2209 = vadd.f32 0.0, %v2208
      %v2210 = vpop.f32.mrb[0].mxu0
      %2211 = vdwg.mxu0
      %v2212 = vadd.f32 %v2025, %v2102
      %v2213 = vadd.f32 %v2026, %v2105
      %v2214 = vadd.f32 %v2027, %v2110
      %v2215 = vadd.f32 %v2028, %v2113
      %v2216 = vadd.f32 %v2029, %v2118
      %v2217 = vadd.f32 %v2030, %v2121
      %v2218 = vadd.f32 %v2031, %v2126
      %v2219 = vadd.f32 %v2032, %v2129
      %v2220 = vadd.f32 %v2033, %v2134
      %v2221 = vadd.f32 %v2034, %v2137
      %v2222 = vadd.f32 %v2035, %v2142
      %v2223 = vadd.f32 %v2036, %v2145
      %v2224 = vadd.f32 %v2037, %v2150
      %v2225 = vadd.f32 %v2038, %v2153
      %v2226 = vadd.f32 %v2039, %v2158
      %v2227 = vadd.f32 %v2040, %v2161
      %v2228 = vadd.f32 %v2041, %v2166
      %v2229 = vadd.f32 %v2042, %v2169
      %v2230 = vadd.f32 %v2043, %v2174
      %v2231 = vadd.f32 %v2044, %v2177
      %v2232 = vadd.f32 %v2045, %v2182
      %v2233 = vadd.f32 %v2046, %v2185
      %v2234 = vadd.f32 %v2047, %v2190
      %v2235 = vadd.f32 %v2048, %v2193
      %v2236 = vadd.f32 %v2049, %v2198
      %v2237 = vadd.f32 %v2050, %v2201
      %v2238 = vadd.f32 %v2051, %v2206
      %v2239 = vadd.f32 %v2052, %v2209
      %v2240 = vld [vmem:[%s226] sm:$0x1]
      %v2242 = vlaneseq
      %v2243 = vshrl.u32 %v2242, 7
      %v2244 = vsub.s32 0, %v2243
      %v2245 = vrot.slane %v2240, %v2244
      %v2247 = vadd.f32 %v2212, %v2245
      %v2248 = vadd.f32 %v2213, %v2245
      %v2249 = vadd.f32 %v2214, %v2245
      %v2250 = vadd.f32 %v2215, %v2245
      %v2251 = vadd.f32 %v2216, %v2245
      %v2252 = vadd.f32 %v2217, %v2245
      %v2253 = vadd.f32 %v2218, %v2245
      %v2254 = vadd.f32 %v2219, %v2245
      %v2255 = vadd.f32 %v2220, %v2245
      %v2256 = vadd.f32 %v2221, %v2245
      %v2257 = vadd.f32 %v2222, %v2245
      %v2258 = vadd.f32 %v2223, %v2245
      %v2259 = vadd.f32 %v2224, %v2245
      %v2260 = vadd.f32 %v2225, %v2245
      %v2261 = vadd.f32 %v2226, %v2245
      %v2262 = vadd.f32 %v2227, %v2245
      %v2263 = vadd.f32 %v2228, %v2245
      %v2264 = vadd.f32 %v2229, %v2245
      %v2265 = vadd.f32 %v2230, %v2245
      %v2266 = vadd.f32 %v2231, %v2245
      %v2267 = vadd.f32 %v2232, %v2245
      %v2268 = vadd.f32 %v2233, %v2245
      %v2269 = vadd.f32 %v2234, %v2245
      %v2270 = vadd.f32 %v2235, %v2245
      %v2271 = vadd.f32 %v2236, %v2245
      %v2272 = vadd.f32 %v2237, %v2245
      %v2273 = vadd.f32 %v2238, %v2245
      %v2274 = vadd.f32 %v2239, %v2245
      %v2275 = vmax.f32 %v2247, 0.0
      %v2276 = vmax.f32 %v2248, 0.0
      %v2277 = vmax.f32 %v2249, 0.0
      %v2278 = vmax.f32 %v2250, 0.0
      %v2279 = vmax.f32 %v2251, 0.0
      %v2280 = vmax.f32 %v2252, 0.0
      %v2281 = vmax.f32 %v2253, 0.0
      %v2282 = vmax.f32 %v2254, 0.0
      %v2283 = vmax.f32 %v2255, 0.0
      %v2284 = vmax.f32 %v2256, 0.0
      %v2285 = vmax.f32 %v2257, 0.0
      %v2286 = vmax.f32 %v2258, 0.0
      %v2287 = vmax.f32 %v2259, 0.0
      %v2288 = vmax.f32 %v2260, 0.0
      %v2289 = vmax.f32 %v2261, 0.0
      %v2290 = vmax.f32 %v2262, 0.0
      %v2291 = vmax.f32 %v2263, 0.0
      %v2292 = vmax.f32 %v2264, 0.0
      %v2293 = vmax.f32 %v2265, 0.0
      %v2294 = vmax.f32 %v2266, 0.0
      %v2295 = vmax.f32 %v2267, 0.0
      %v2296 = vmax.f32 %v2268, 0.0
      %v2297 = vmax.f32 %v2269, 0.0
      %v2298 = vmax.f32 %v2270, 0.0
      %v2299 = vmax.f32 %v2271, 0.0
      %v2300 = vmax.f32 %v2272, 0.0
      %v2301 = vmax.f32 %v2273, 0.0
      %v2302 = vmax.f32 %v2274, 0.0
      %2303 = vst [vmem:[%s238] sm:$0xff] %v2275
      %2304 = vst [vmem:[%s238 + $0x8] sm:$0xff] %v2276
      %2305 = vst [vmem:[%s238 + $0x10] sm:$0xff] %v2277
      %2306 = vst [vmem:[%s238 + $0x18] sm:$0xff] %v2278
      %2307 = vst [vmem:[%s238 + $0x20] sm:$0xff] %v2279
      %2308 = vst [vmem:[%s238 + $0x28] sm:$0xff] %v2280
      %2309 = vst [vmem:[%s238 + $0x30] sm:$0xff] %v2281
      %2310 = vst [vmem:[%s238 + $0x38] sm:$0xff] %v2282
      %2311 = vst [vmem:[%s238 + $0x40] sm:$0xff] %v2283
      %2312 = vst [vmem:[%s238 + $0x48] sm:$0xff] %v2284
      %2313 = vst [vmem:[%s238 + $0x50] sm:$0xff] %v2285
      %2314 = vst [vmem:[%s238 + $0x58] sm:$0xff] %v2286
      %2315 = vst [vmem:[%s238 + $0x60] sm:$0xff] %v2287
      %2316 = vst [vmem:[%s238 + $0x68] sm:$0xff] %v2288
      %2317 = vst [vmem:[%s238 + $0x70] sm:$0xff] %v2289
      %2318 = vst [vmem:[%s238 + $0x78] sm:$0xff] %v2290
      %2319 = vst [vmem:[%s238 + $0x80] sm:$0xff] %v2291
      %2320 = vst [vmem:[%s238 + $0x88] sm:$0xff] %v2292
      %2321 = vst [vmem:[%s238 + $0x90] sm:$0xff] %v2293
      %2322 = vst [vmem:[%s238 + $0x98] sm:$0xff] %v2294
      %2323 = vst [vmem:[%s238 + $0xa0] sm:$0xff] %v2295
      %2324 = vst [vmem:[%s238 + $0xa8] sm:$0xff] %v2296
      %2325 = vst [vmem:[%s238 + $0xb0] sm:$0xff] %v2297
      %2326 = vst [vmem:[%s238 + $0xb8] sm:$0xff] %v2298
      %2327 = vst [vmem:[%s238 + $0xc0] sm:$0xff] %v2299
      %2328 = vst [vmem:[%s238 + $0xc8] sm:$0xff] %v2300
      %2329 = vst [vmem:[%s238 + $0xd0] sm:$0xff] %v2301
      %2330 = vst [vmem:[%s238 + $0xd8] sm:$0xff] %v2302
      %s2331 = smul.u32 28, %s21
      %p2332 = scmp.lt.s32.totalorder %s19, 1
      %s2333 = scalar_select %p2332, %s19, 1
      %p2334 = scmp.lt.s32.totalorder %s2331, 27
      %s2335 = scalar_select %p2334, %s2331, 27
      %p2336 = scmp.lt.s32.totalorder %s20, 0
      %s2337 = scalar_select %p2336, %s20, 0
      %s2338 = sadd.s32 %s2337, %s2335
      %s2339 = smul.addr %s2333, 28
      %s2340 = sadd.s32 %s2338, %s2339
      %s2341 = smul.addr %s2340, 8
      %s2342 = scalar_lea.vmem %s3, %s2341
      // Predicated region
      $region33: #{basic_conv2d.1} parent=31 // pred_check
        %p2343 = pneg %p133
      $region34: #{basic_conv2d.1} parent=31 // pred_check_branch
        %2345 = sbr.rel (%p2343) target = $region36
      $region35: #{basic_conv2d.1} parent=31 // pred_region
        %s2346 = smul.u32 28, %s21
      $region36: #{basic_conv2d.1} parent=31 // pred_fallthru
        _
    $region32: #{basic_conv2d.1} parent=5 // pred_fallthru
      _
    %p2347 = scmp.le.s32.totalorder 2, %s9
    // Predicated region
    $region37: #{basic_conv2d.1} parent=5 // pred_check
      %p2348 = pneg %p2347
    $region38: #{basic_conv2d.1} parent=5 // pred_check_branch
      %2350 = sbr.rel (%p2348) target = $region40
    $region39: #{basic_conv2d.1} parent=5 // pred_region
      %s2351 = ssub.s32 %s9, 2
      // Predicated region
      $region41: #{basic_conv2d.1} parent=39 // pred_check
        %p2352 = pneg %p139
      $region42: #{basic_conv2d.1} parent=39 // pred_check_branch
        %2354 = sbr.rel (%p2352) target = $region44
      $region43: #{basic_conv2d.1} parent=39 // pred_region
        %s2355 = smul.u32 28, %s24
        %p2356 = scmp.lt.s32.totalorder %s22, 1
        %s2357 = scalar_select %p2356, %s22, 1
        %p2358 = scmp.lt.s32.totalorder %s2355, 27
        %s2359 = scalar_select %p2358, %s2355, 27
        %p2360 = scmp.lt.s32.totalorder %s23, 0
        %s2361 = scalar_select %p2360, %s23, 0
        %s2362 = sadd.s32 %s2361, %s2359
        %s2363 = smul.addr %s2357, 28
        %s2364 = sadd.s32 %s2362, %s2363
        %s2365 = smul.addr %s2364, 8
        %s2366 = scalar_lea.vmem %s3, %s2365
      $region44: #{basic_conv2d.1} parent=39 // pred_fallthru
        _
    $region40: #{basic_conv2d.1} parent=5 // pred_fallthru
      _
  $region6: #{basic_conv2d.1} parent=0 // loop_footer
    %s13 = sadd.s32 1, %s9
  $region7: #{basic_conv2d.1} parent=0 // loop_footer_branch
    %8 = sbr.rel target = $region3
  $region8: #{basic_conv2d.1} parent=0 // loop_exit
    _

</llo_original>
